<compile_context>
chip_gen: v5e
topology: v5e:2x2
jax: 0.10.0
libtpu: 0.0.40
codegen_flags: <defaults>
</compile_context>

<pallas_src>
import functools

import jax
import jax.numpy as jnp
from jax import lax
from jax.experimental import pallas as pl
from jax.experimental.pallas import tpu as pltpu

_HEAD_N = 128  # lane-dense fused-head width (action logits + value + zero pad)


def _a2c_kernel(n_hidden_layers, n_actions, *refs):
    # refs layout:
    #   x_ref,
    #   (w_i, b_i) for each hidden layer   (w bf16, b f32)
    #   w_head, b_head                     (fused action+value head, lane-padded)
    #   out_ref                            ((tile_b, 128) slab: probs | value | 0)
    x_ref = refs[0]
    idx = 1
    h = x_ref[...]
    for _ in range(n_hidden_layers):
        w_ref, b_ref = refs[idx], refs[idx + 1]
        idx += 2
        h = (
            jnp.dot(h.astype(w_ref.dtype), w_ref[...],
                    preferred_element_type=jnp.float32)
            + b_ref[...]
        )
        h = jnp.maximum(h, 0.0)  # ReLU (f32)

    wh_ref, bh_ref, out_ref = refs[idx], refs[idx + 1], refs[idx + 2]

    # Single fused head matmul: lanes [0, n_actions) = action logits,
    # lane n_actions = value, remaining lanes = 0 (zero weights/bias).
    head = (
        jnp.dot(h.astype(wh_ref.dtype), wh_ref[...],
                preferred_element_type=jnp.float32)
        + bh_ref[...]
    )

    lane = lax.broadcasted_iota(jnp.int32, head.shape, dimension=1)
    act_mask = lane < n_actions

    # Masked, numerically-stable softmax over the action lanes only.
    # exp(-1e30 - m) underflows to exactly 0, so a single where suffices.
    logits = jnp.where(act_mask, head, jnp.float32(-1e30))
    m = jnp.max(logits, axis=-1, keepdims=True)
    e = jnp.exp(logits - m)
    s = jnp.sum(e, axis=-1, keepdims=True)
    inv = pl.reciprocal(s, approx=True)       # EUP slot
    inv = inv * (2.0 - s * inv)               # one Newton step -> ~f32 accuracy
    probs = e * inv

    # Lane-dense output slab: probs in action lanes, value in lane n_actions.
    out_ref[...] = probs + jnp.where(lane == n_actions, head, 0.0)


def prepare_params(fc_params, action_params, value_params,
                   compute_dtype=jnp.bfloat16):
    """One-time parameter prep (call once, reuse across forward calls).

    Casts the matmul operands to `compute_dtype` (bf16 for native MXU rate),
    keeps biases in f32, and fuses the action + value heads into a single
    lane-padded (n_last, 128) weight / (1, 128) bias.
    """
    fc_prep = []
    for w, b in fc_params:
        fc_prep.append((jnp.asarray(w, jnp.float32).astype(compute_dtype),
                        jnp.asarray(b, jnp.float32).reshape(1, -1)))

    wa, ba = action_params
    wv, bv = value_params
    n_last, n_actions = wa.shape
    assert n_actions + 1 <= _HEAD_N, "n_actions + 1 must fit in 128 lanes"

    w_head = jnp.zeros((n_last, _HEAD_N), jnp.float32)
    w_head = w_head.at[:, :n_actions].set(jnp.asarray(wa, jnp.float32))
    w_head = w_head.at[:, n_actions].set(jnp.asarray(wv, jnp.float32)[:, 0])
    w_head = w_head.astype(compute_dtype)

    b_head = jnp.zeros((1, _HEAD_N), jnp.float32)
    b_head = b_head.at[:, :n_actions].set(
        jnp.asarray(ba, jnp.float32).reshape(1, -1))
    b_head = b_head.at[:, n_actions].set(
        jnp.asarray(bv, jnp.float32).reshape(()))

    return {
        "fc": fc_prep,
        "w_head": w_head,
        "b_head": b_head,
        "n_actions": int(n_actions),
        "compute_dtype": compute_dtype,
    }


def _pick_tile_b(b_pad):
    # Largest tile in {512, 256, 128} that keeps at least 2 grid steps
    # (so dimension_semantics=("parallel",) can shard across v7x's 2 TCs);
    # otherwise 128 (single step for tiny batches).
    for t in (512, 256, 128):
        if b_pad % t == 0 and b_pad // t >= 2:
            return t
    return 128


def a2c_forward(x, params):
    """Run the A2CNet forward pass in one fused Pallas kernel.

    x: (B, ...) input; flattened to (B, F) like x.view(x.size(0), -1).
    params: output of prepare_params().
    Returns (probs (B, n_actions), value (B, 1)) in float32.
    """
    fc_prep = params["fc"]
    w_head, b_head = params["w_head"], params["b_head"]
    n_actions = params["n_actions"]
    compute_dtype = params["compute_dtype"]

    B = x.shape[0]
    x2d = x.reshape(B, -1).astype(compute_dtype)
    f_in = x2d.shape[1]

    # Pad batch to a multiple of 128 (pad rows are sliced off after the call).
    b_pad = -(-B // 128) * 128
    if b_pad != B:
        x2d = jnp.pad(x2d, ((0, b_pad - B), (0, 0)))

    tile_b = _pick_tile_b(b_pad)
    grid = (b_pad // tile_b,)

    # TODO(synk): K-tile the first-layer contraction (extra "arbitrary" grid
    # axis over f_in + f32 VMEM accumulator) for very large observation sizes
    # where 2*tile_b*f_in*2B would exceed v7x's 64 MiB VMEM.
    # TODO(synk): for an RL rollout loop with fixed weights, hoist weight DMAs
    # out of the per-step cost via cross-pallas_call weight residency (P10).

    flat_args = [x2d]
    in_specs = [pl.BlockSpec((tile_b, f_in), lambda i: (i, 0))]
    weight_bytes = 0
    for w, b in fc_prep:
        flat_args += [w, b]
        # Constant index_map across the grid -> single-buffer the weights.
        in_specs += [
            pl.BlockSpec(w.shape, lambda i: (0, 0),
                         pipeline_mode=pl.Buffered(1)),
            pl.BlockSpec(b.shape, lambda i: (0, 0),
                         pipeline_mode=pl.Buffered(1)),
        ]
        weight_bytes += w.size * w.dtype.itemsize + b.size * b.dtype.itemsize
    flat_args += [w_head, b_head]
    in_specs += [
        pl.BlockSpec(w_head.shape, lambda i: (0, 0),
                     pipeline_mode=pl.Buffered(1)),
        pl.BlockSpec(b_head.shape, lambda i: (0, 0),
                     pipeline_mode=pl.Buffered(1)),
    ]
    weight_bytes += (w_head.size * w_head.dtype.itemsize
                     + b_head.size * b_head.dtype.itemsize)

    out_shape = jax.ShapeDtypeStruct((b_pad, _HEAD_N), jnp.float32)
    out_spec = pl.BlockSpec((tile_b, _HEAD_N), lambda i: (i, 0))

    # VMEM budget: double-buffered x tile + double-buffered out tile +
    # single-buffered weights + headroom; clamped to stay within every
    # generation's physical VMEM (v7x: 64 MiB).
    x_itemsize = jnp.dtype(compute_dtype).itemsize
    needed = (2 * tile_b * f_in * x_itemsize
              + 2 * tile_b * _HEAD_N * 4
              + weight_bytes
              + (8 << 20))
    vmem_limit = int(min(48 << 20, max(16 << 20, needed)))

    kernel = functools.partial(_a2c_kernel, len(fc_prep), n_actions)

    out = pl.pallas_call(
        kernel,
        out_shape=out_shape,
        grid=grid,
        in_specs=in_specs,
        out_specs=out_spec,
        compiler_params=pltpu.CompilerParams(
            dimension_semantics=("parallel",),
            vmem_limit_bytes=vmem_limit,
        ),
    )(*flat_args)

    probs = out[:B, :n_actions]
    value = out[:B, n_actions:n_actions + 1]
    return probs, value


def init_params(key, n_input_features, n_actions, net_architecture):
    """Deterministic init matching the PyTorch module's parameter shapes
    (nn.Linear default: U(-1/sqrt(fan_in), 1/sqrt(fan_in)))."""
    fc_params = []
    n_in = n_input_features
    for n_out in net_architecture:
        key, kw, kb = jax.random.split(key, 3)
        bound = 1.0 / jnp.sqrt(n_in)
        w = jax.random.uniform(kw, (n_in, n_out), jnp.float32, -bound, bound)
        b = jax.random.uniform(kb, (1, n_out), jnp.float32, -bound, bound)
        fc_params.append((w, b))
        n_in = n_out

    key, kw, kb = jax.random.split(key, 3)
    bound = 1.0 / jnp.sqrt(n_in)
    wa = jax.random.uniform(kw, (n_in, n_actions), jnp.float32, -bound, bound)
    ba = jax.random.uniform(kb, (1, n_actions), jnp.float32, -bound, bound)

    key, kw, kb = jax.random.split(key, 3)
    wv = jax.random.uniform(kw, (n_in, 1), jnp.float32, -bound, bound)
    bv = jax.random.uniform(kb, (1, 1), jnp.float32, -bound, bound)

    return fc_params, (wa, ba), (wv, bv)


def a2c_reference(x, fc_params, action_params, value_params):
    """Pure-JAX f32 reference mirroring the PyTorch forward."""
    h = x.reshape(x.shape[0], -1).astype(jnp.float32)
    for w, b in fc_params:
        h = jnp.maximum(h @ w + b, 0.0)
    logits = h @ action_params[0] + action_params[1]
    probs = jax.nn.softmax(logits, axis=-1)
    value = h @ value_params[0] + value_params[1]
    return probs, value


if __name__ == "__main__":
    # Small, module-consistent shapes: input x is (batch, C, H, W) = (2, 4, 16, 16),
    # so n_input_features = 4*16*16 = 1024 after the flatten in forward().
    batch, C, H, W = 2, 4, 16, 16
    n_input_features = C * H * W
    n_actions = 8
    net_architecture = [64, 32]

    key = jax.random.PRNGKey(0)
    key, kx = jax.random.split(key)
    x = jax.random.normal(kx, (batch, C, H, W), dtype=jnp.float32)

    fc_params, action_params, value_params = init_params(
        key, n_input_features, n_actions, net_architecture
    )
    # One-time parameter prep (bf16 matmul weights + fused lane-padded head).
    prepared = prepare_params(fc_params, action_params, value_params)

    probs, value = a2c_forward(x, prepared)
    probs, value = jax.block_until_ready((probs, value))

    probs_ref, value_ref = a2c_reference(x, fc_params, action_params, value_params)
    assert probs.shape == (batch, n_actions)
    assert value.shape == (batch, 1)
    # bf16 matmul path vs f32 reference -> relaxed tolerances.
    assert jnp.allclose(probs, probs_ref, rtol=2e-2, atol=2e-2)
    assert jnp.allclose(value, value_ref, rtol=3e-2, atol=3e-2)
    assert jnp.allclose(jnp.sum(probs, axis=-1), 1.0, atol=1e-3)

    # Larger-batch smoke test exercising the tiled parallel grid path
    # (B=256 -> two 128-row tiles, shardable across v7x TensorCores).
    key, kx2 = jax.random.split(key)
    x_big = jax.random.normal(kx2, (256, C, H, W), dtype=jnp.float32)
    probs_b, value_b = a2c_forward(x_big, prepared)
    probs_b, value_b = jax.block_until_ready((probs_b, value_b))
    probs_br, value_br = a2c_reference(x_big, fc_params, action_params, value_params)
    assert probs_b.shape == (256, n_actions)
    assert value_b.shape == (256, 1)
    assert jnp.allclose(probs_b, probs_br, rtol=2e-2, atol=2e-2)
    assert jnp.allclose(value_b, value_br, rtol=3e-2, atol=3e-2)
    assert jnp.allclose(jnp.sum(probs_b, axis=-1), 1.0, atol=1e-3)

    print("KERNEL_OK")
</pallas_src>

<mosaic_0001>
module attributes {stable_mosaic.version = 11 : i64} {
  func.func @_a2c_kernel(%arg0: i32, %arg1: memref<128x1024xbf16, #tpu.memory_space<vmem>>, %arg2: memref<1024x64xbf16, #tpu.memory_space<vmem>>, %arg3: memref<1x64xf32, #tpu.memory_space<vmem>>, %arg4: memref<64x32xbf16, #tpu.memory_space<vmem>>, %arg5: memref<1x32xf32, #tpu.memory_space<vmem>>, %arg6: memref<32x128xbf16, #tpu.memory_space<vmem>>, %arg7: memref<1x128xf32, #tpu.memory_space<vmem>>, %arg8: memref<128x128xf32, #tpu.memory_space<vmem>>) attributes {dimension_semantics = [#tpu.dimension_semantics<parallel>], iteration_bounds = array<i64: 1>, scalar_prefetch = 0 : i64, scratch_operands = 0 : i64, tpu.core_type = #tpu.core_type<tc>, window_params = [{transform_indices = @transform_0, window_bounds = array<i64: 128, 1024>}, {pipeline_mode = #tpu.pipeline_mode<synchronous>, transform_indices = @transform_1, window_bounds = array<i64: 1024, 64>}, {pipeline_mode = #tpu.pipeline_mode<synchronous>, transform_indices = @transform_2, window_bounds = array<i64: 1, 64>}, {pipeline_mode = #tpu.pipeline_mode<synchronous>, transform_indices = @transform_3, window_bounds = array<i64: 64, 32>}, {pipeline_mode = #tpu.pipeline_mode<synchronous>, transform_indices = @transform_4, window_bounds = array<i64: 1, 32>}, {pipeline_mode = #tpu.pipeline_mode<synchronous>, transform_indices = @transform_5, window_bounds = array<i64: 32, 128>}, {pipeline_mode = #tpu.pipeline_mode<synchronous>, transform_indices = @transform_6, window_bounds = array<i64: 1, 128>}, {transform_indices = @transform_7, window_bounds = array<i64: 128, 128>}]} {
    %c0 = arith.constant 0 : index
    %c0_0 = arith.constant 0 : index
    %0 = vector.load %arg1[%c0, %c0_0] : memref<128x1024xbf16, #tpu.memory_space<vmem>>, vector<128x1024xbf16>
    %c0_1 = arith.constant 0 : index
    %c0_2 = arith.constant 0 : index
    %1 = vector.load %arg2[%c0_1, %c0_2] : memref<1024x64xbf16, #tpu.memory_space<vmem>>, vector<1024x64xbf16>
    %cst = arith.constant dense<0.000000e+00> : vector<128x64xf32>
    %2 = tpu.matmul %0, %1, %cst {dimension_numbers = #tpu.dot_dimension_numbers<[1], [0], [0], [1], [0, 0, 1, 1], [], []>} : vector<128x1024xbf16>, vector<1024x64xbf16>, vector<128x64xf32> -> vector<128x64xf32>
    %c0_3 = arith.constant 0 : index
    %c0_4 = arith.constant 0 : index
    %3 = vector.load %arg3[%c0_3, %c0_4] : memref<1x64xf32, #tpu.memory_space<vmem>>, vector<1x64xf32>
    %4 = vector.broadcast %3 : vector<1x64xf32> to vector<128x64xf32>
    %5 = arith.addf %2, %4 : vector<128x64xf32>
    %cst_5 = arith.constant 0.000000e+00 : f32
    %6 = vector.broadcast %cst_5 : f32 to vector<128x64xf32>
    %7 = arith.maximumf %5, %6 : vector<128x64xf32>
    %8 = arith.truncf %7 : vector<128x64xf32> to vector<128x64xbf16>
    %c0_6 = arith.constant 0 : index
    %c0_7 = arith.constant 0 : index
    %9 = vector.load %arg4[%c0_6, %c0_7] : memref<64x32xbf16, #tpu.memory_space<vmem>>, vector<64x32xbf16>
    %cst_8 = arith.constant dense<0.000000e+00> : vector<128x32xf32>
    %10 = tpu.matmul %8, %9, %cst_8 {dimension_numbers = #tpu.dot_dimension_numbers<[1], [0], [0], [1], [0, 0, 1, 1], [], []>} : vector<128x64xbf16>, vector<64x32xbf16>, vector<128x32xf32> -> vector<128x32xf32>
    %c0_9 = arith.constant 0 : index
    %c0_10 = arith.constant 0 : index
    %11 = vector.load %arg5[%c0_9, %c0_10] : memref<1x32xf32, #tpu.memory_space<vmem>>, vector<1x32xf32>
    %12 = vector.broadcast %11 : vector<1x32xf32> to vector<128x32xf32>
    %13 = arith.addf %10, %12 : vector<128x32xf32>
    %cst_11 = arith.constant 0.000000e+00 : f32
    %14 = vector.broadcast %cst_11 : f32 to vector<128x32xf32>
    %15 = arith.maximumf %13, %14 : vector<128x32xf32>
    %16 = arith.truncf %15 : vector<128x32xf32> to vector<128x32xbf16>
    %c0_12 = arith.constant 0 : index
    %c0_13 = arith.constant 0 : index
    %17 = vector.load %arg6[%c0_12, %c0_13] : memref<32x128xbf16, #tpu.memory_space<vmem>>, vector<32x128xbf16>
    %cst_14 = arith.constant dense<0.000000e+00> : vector<128x128xf32>
    %18 = tpu.matmul %16, %17, %cst_14 {dimension_numbers = #tpu.dot_dimension_numbers<[1], [0], [0], [1], [0, 0, 1, 1], [], []>} : vector<128x32xbf16>, vector<32x128xbf16>, vector<128x128xf32> -> vector<128x128xf32>
    %c0_15 = arith.constant 0 : index
    %c0_16 = arith.constant 0 : index
    %19 = vector.load %arg7[%c0_15, %c0_16] : memref<1x128xf32, #tpu.memory_space<vmem>>, vector<1x128xf32>
    %20 = vector.broadcast %19 : vector<1x128xf32> to vector<128x128xf32>
    %21 = arith.addf %18, %20 : vector<128x128xf32>
    %22 = tpu.iota {dimensions = array<i32: 1>} : vector<128x128xi32>
    %c8_i32 = arith.constant 8 : i32
    %23 = vector.broadcast %c8_i32 : i32 to vector<128x128xi32>
    %24 = arith.cmpi slt, %22, %23 : vector<128x128xi32>
    %cst_17 = arith.constant -1.000000e+30 : f32
    %25 = vector.broadcast %cst_17 : f32 to vector<128x128xf32>
    %26 = arith.select %24, %21, %25 : vector<128x128xi1>, vector<128x128xf32>
    %cst_18 = arith.constant dense<0xFF800000> : vector<128xf32>
    %27 = vector.multi_reduction <maximumf>, %26, %cst_18 [1] : vector<128x128xf32> to vector<128xf32>
    %28 = vector.shape_cast %27 : vector<128xf32> to vector<128x1xf32>
    %29 = vector.broadcast %28 : vector<128x1xf32> to vector<128x128xf32>
    %30 = arith.subf %26, %29 : vector<128x128xf32>
    %31 = math.exp %30 : vector<128x128xf32>
    %cst_19 = arith.constant dense<0.000000e+00> : vector<128xf32>
    %32 = vector.multi_reduction <add>, %31, %cst_19 [1] : vector<128x128xf32> to vector<128xf32>
    %33 = vector.shape_cast %32 : vector<128xf32> to vector<128x1xf32>
    %34 = tpu.reciprocal %33 {approx = true} : vector<128x1xf32> -> vector<128x1xf32>
    %35 = arith.mulf %33, %34 : vector<128x1xf32>
    %cst_20 = arith.constant 2.000000e+00 : f32
    %36 = vector.broadcast %cst_20 : f32 to vector<128x1xf32>
    %37 = arith.subf %36, %35 : vector<128x1xf32>
    %38 = arith.mulf %34, %37 : vector<128x1xf32>
    %39 = vector.broadcast %38 : vector<128x1xf32> to vector<128x128xf32>
    %40 = arith.mulf %31, %39 : vector<128x128xf32>
    %c8_i32_21 = arith.constant 8 : i32
    %41 = vector.broadcast %c8_i32_21 : i32 to vector<128x128xi32>
    %42 = arith.cmpi eq, %22, %41 : vector<128x128xi32>
    %cst_22 = arith.constant 0.000000e+00 : f32
    %43 = vector.broadcast %cst_22 : f32 to vector<128x128xf32>
    %44 = arith.select %42, %21, %43 : vector<128x128xi1>, vector<128x128xf32>
    %45 = arith.addf %40, %44 : vector<128x128xf32>
    %c0_23 = arith.constant 0 : index
    %c0_24 = arith.constant 0 : index
    %46 = vector.load %arg8[%c0_23, %c0_24] : memref<128x128xf32, #tpu.memory_space<vmem>>, vector<128x128xf32>
    tpu.vector_store %arg8[%c0_23, %c0_24], %45 {strides = array<i32>} : memref<128x128xf32, #tpu.memory_space<vmem>>, vector<128x128xf32>,
    return
  }
  func.func @transform_0(%arg0: i32) -> (i32, i32) {
    %c0_i32 = arith.constant 0 : i32
    %c0_i32_0 = arith.constant 0 : i32
    return %arg0, %c0_i32 : i32, i32
  }
  func.func @transform_1(%arg0: i32) -> (i32, i32) {
    %c0_i32 = arith.constant 0 : i32
    %c0_i32_0 = arith.constant 0 : i32
    %c0_i32_1 = arith.constant 0 : i32
    return %c0_i32, %c0_i32_0 : i32, i32
  }
  func.func @transform_2(%arg0: i32) -> (i32, i32) {
    %c0_i32 = arith.constant 0 : i32
    %c0_i32_0 = arith.constant 0 : i32
    %c0_i32_1 = arith.constant 0 : i32
    return %c0_i32, %c0_i32_0 : i32, i32
  }
  func.func @transform_3(%arg0: i32) -> (i32, i32) {
    %c0_i32 = arith.constant 0 : i32
    %c0_i32_0 = arith.constant 0 : i32
    %c0_i32_1 = arith.constant 0 : i32
    return %c0_i32, %c0_i32_0 : i32, i32
  }
  func.func @transform_4(%arg0: i32) -> (i32, i32) {
    %c0_i32 = arith.constant 0 : i32
    %c0_i32_0 = arith.constant 0 : i32
    %c0_i32_1 = arith.constant 0 : i32
    return %c0_i32, %c0_i32_0 : i32, i32
  }
  func.func @transform_5(%arg0: i32) -> (i32, i32) {
    %c0_i32 = arith.constant 0 : i32
    %c0_i32_0 = arith.constant 0 : i32
    %c0_i32_1 = arith.constant 0 : i32
    return %c0_i32, %c0_i32_0 : i32, i32
  }
  func.func @transform_6(%arg0: i32) -> (i32, i32) {
    %c0_i32 = arith.constant 0 : i32
    %c0_i32_0 = arith.constant 0 : i32
    %c0_i32_1 = arith.constant 0 : i32
    return %c0_i32, %c0_i32_0 : i32, i32
  }
  func.func @transform_7(%arg0: i32) -> (i32, i32) {
    %c0_i32 = arith.constant 0 : i32
    %c0_i32_0 = arith.constant 0 : i32
    return %arg0, %c0_i32 : i32, i32
  }
}

</mosaic_0001>

<llo_original>
// kernel: tpu_custom_call.1
$region0: #{tpu_custom_call.1}
  #allocation0 [shape = 'u32[]', space=smem, size = 0x4, offset = 0x4, fixed_abs, tag = 'smem constant byte address 0x4 - core index']
  #allocation1 [shape = 'u32[72,128]{1,0:T(1,128)}', space=vmem, size = 0x9000, scoped, tag = 'internal scratch']
  %s0 = inlined_call_operand.vmem [shape: bf16[128,1024], index: 0, kind: input, shape index: {}]
  %s1 = inlined_call_operand.vmem [shape: bf16[1024,64], index: 1, kind: input, shape index: {}]
  %s2 = inlined_call_operand.vmem [shape: f32[1,64], index: 2, kind: input, shape index: {}]
  %s3 = inlined_call_operand.vmem [shape: bf16[64,32], index: 3, kind: input, shape index: {}]
  %s4 = inlined_call_operand.vmem [shape: f32[1,32], index: 4, kind: input, shape index: {}]
  %s5 = inlined_call_operand.vmem [shape: bf16[32,128], index: 5, kind: input, shape index: {}]
  %s6 = inlined_call_operand.vmem [shape: f32[1,128], index: 6, kind: input, shape index: {}]
  %s7 = inlined_call_operand.hbm [shape: f32[128,128], index: 7, kind: output, shape index: {}]
  %s8 = sld [smem:[#allocation0]]
  $region38: #{tpu_custom_call.1} parent=0
    _
  %s10 = ssub.s32 1, %s8
  %s11 = scalar_select 0, %s10, %s8
  $region1: #{tpu_custom_call.1} parent=0
    #allocation2 [shape = 'u8[65536]{0}', space=vmem, size = 0x10000, scoped, tag = 'output window, operand 0, single buffered']
    #allocation3 [shape = 's32[1]{0}', space=sflag, size = 0x4, scoped, tag = 'scoped memory for tpu_custom_call.1']
    %12 = vsyncpa [#allocation3], 0
    // Predicated region
    $region2: #{tpu_custom_call.1} parent=1 // pred_check
      _
    $region3: #{tpu_custom_call.1} parent=1 // pred_check_branch
      %14 = sbr.rel (0) target = $region5
    $region4: #{tpu_custom_call.1} parent=1 // pred_region
      _
    $region5: #{tpu_custom_call.1} parent=1 // pred_fallthru
      _
    // Predicated region
    $region6: #{tpu_custom_call.1} parent=1 // pred_check
      _
    $region7: #{tpu_custom_call.1} parent=1 // pred_check_branch
      %16 = sbr.rel (0) target = $region9
    $region8: #{tpu_custom_call.1} parent=1 // pred_region
      _
    $region9: #{tpu_custom_call.1} parent=1 // pred_fallthru
      _
    // Predicated region
    $region10: #{tpu_custom_call.1} parent=1 // pred_check
      _
    $region11: #{tpu_custom_call.1} parent=1 // pred_check_branch
      %18 = sbr.rel (0) target = $region13
    $region12: #{tpu_custom_call.1} parent=1 // pred_region
      _
    $region13: #{tpu_custom_call.1} parent=1 // pred_fallthru
      _
    // Predicated region
    $region14: #{tpu_custom_call.1} parent=1 // pred_check
      _
    $region15: #{tpu_custom_call.1} parent=1 // pred_check_branch
      %20 = sbr.rel (0) target = $region17
    $region16: #{tpu_custom_call.1} parent=1 // pred_region
      _
    $region17: #{tpu_custom_call.1} parent=1 // pred_fallthru
      _
    // Predicated region
    $region18: #{tpu_custom_call.1} parent=1 // pred_check
      _
    $region19: #{tpu_custom_call.1} parent=1 // pred_check_branch
      %22 = sbr.rel (0) target = $region21
    $region20: #{tpu_custom_call.1} parent=1 // pred_region
      _
    $region21: #{tpu_custom_call.1} parent=1 // pred_fallthru
      _
    // Predicated region
    $region22: #{tpu_custom_call.1} parent=1 // pred_check
      _
    $region23: #{tpu_custom_call.1} parent=1 // pred_check_branch
      %24 = sbr.rel (0) target = $region25
    $region24: #{tpu_custom_call.1} parent=1 // pred_region
      _
    $region25: #{tpu_custom_call.1} parent=1 // pred_fallthru
      _
    // Predicated region
    $region26: #{tpu_custom_call.1} parent=1 // pred_check
      _
    $region27: #{tpu_custom_call.1} parent=1 // pred_check_branch
      %26 = sbr.rel (0) target = $region29
    $region28: #{tpu_custom_call.1} parent=1 // pred_region
      _
    $region29: #{tpu_custom_call.1} parent=1 // pred_fallthru
      _
    %v28 = vld [vmem:[%s0] sm:$0xff]
    %v29 = vld [vmem:[%s0 + $0x8] sm:$0xff]
    %v30 = vld [vmem:[%s0 + $0x10] sm:$0xff]
    %v31 = vld [vmem:[%s0 + $0x18] sm:$0xff]
    %v32 = vld [vmem:[%s0 + $0x20] sm:$0xff]
    %v33 = vld [vmem:[%s0 + $0x28] sm:$0xff]
    %v34 = vld [vmem:[%s0 + $0x30] sm:$0xff]
    %v35 = vld [vmem:[%s0 + $0x38] sm:$0xff]
    %v36 = vld [vmem:[%s0 + $0x40] sm:$0xff]
    %v37 = vld [vmem:[%s0 + $0x48] sm:$0xff]
    %v38 = vld [vmem:[%s0 + $0x50] sm:$0xff]
    %v39 = vld [vmem:[%s0 + $0x58] sm:$0xff]
    %v40 = vld [vmem:[%s0 + $0x60] sm:$0xff]
    %v41 = vld [vmem:[%s0 + $0x68] sm:$0xff]
    %v42 = vld [vmem:[%s0 + $0x70] sm:$0xff]
    %v43 = vld [vmem:[%s0 + $0x78] sm:$0xff]
    %v44 = vld [vmem:[%s0 + $0x80] sm:$0xff]
    %v45 = vld [vmem:[%s0 + $0x88] sm:$0xff]
    %v46 = vld [vmem:[%s0 + $0x90] sm:$0xff]
    %v47 = vld [vmem:[%s0 + $0x98] sm:$0xff]
    %v48 = vld [vmem:[%s0 + $0xa0] sm:$0xff]
    %v49 = vld [vmem:[%s0 + $0xa8] sm:$0xff]
    %v50 = vld [vmem:[%s0 + $0xb0] sm:$0xff]
    %v51 = vld [vmem:[%s0 + $0xb8] sm:$0xff]
    %v52 = vld [vmem:[%s0 + $0xc0] sm:$0xff]
    %v53 = vld [vmem:[%s0 + $0xc8] sm:$0xff]
    %v54 = vld [vmem:[%s0 + $0xd0] sm:$0xff]
    %v55 = vld [vmem:[%s0 + $0xd8] sm:$0xff]
    %v56 = vld [vmem:[%s0 + $0xe0] sm:$0xff]
    %v57 = vld [vmem:[%s0 + $0xe8] sm:$0xff]
    %v58 = vld [vmem:[%s0 + $0xf0] sm:$0xff]
    %v59 = vld [vmem:[%s0 + $0xf8] sm:$0xff]
    %v60 = vld [vmem:[%s0 + $0x100] sm:$0xff]
    %v61 = vld [vmem:[%s0 + $0x108] sm:$0xff]
    %v62 = vld [vmem:[%s0 + $0x110] sm:$0xff]
    %v63 = vld [vmem:[%s0 + $0x118] sm:$0xff]
    %v64 = vld [vmem:[%s0 + $0x120] sm:$0xff]
    %v65 = vld [vmem:[%s0 + $0x128] sm:$0xff]
    %v66 = vld [vmem:[%s0 + $0x130] sm:$0xff]
    %v67 = vld [vmem:[%s0 + $0x138] sm:$0xff]
    %v68 = vld [vmem:[%s0 + $0x140] sm:$0xff]
    %v69 = vld [vmem:[%s0 + $0x148] sm:$0xff]
    %v70 = vld [vmem:[%s0 + $0x150] sm:$0xff]
    %v71 = vld [vmem:[%s0 + $0x158] sm:$0xff]
    %v72 = vld [vmem:[%s0 + $0x160] sm:$0xff]
    %v73 = vld [vmem:[%s0 + $0x168] sm:$0xff]
    %v74 = vld [vmem:[%s0 + $0x170] sm:$0xff]
    %v75 = vld [vmem:[%s0 + $0x178] sm:$0xff]
    %v76 = vld [vmem:[%s0 + $0x180] sm:$0xff]
    %v77 = vld [vmem:[%s0 + $0x188] sm:$0xff]
    %v78 = vld [vmem:[%s0 + $0x190] sm:$0xff]
    %v79 = vld [vmem:[%s0 + $0x198] sm:$0xff]
    %v80 = vld [vmem:[%s0 + $0x1a0] sm:$0xff]
    %v81 = vld [vmem:[%s0 + $0x1a8] sm:$0xff]
    %v82 = vld [vmem:[%s0 + $0x1b0] sm:$0xff]
    %v83 = vld [vmem:[%s0 + $0x1b8] sm:$0xff]
    %v84 = vld [vmem:[%s0 + $0x1c0] sm:$0xff]
    %v85 = vld [vmem:[%s0 + $0x1c8] sm:$0xff]
    %v86 = vld [vmem:[%s0 + $0x1d0] sm:$0xff]
    %v87 = vld [vmem:[%s0 + $0x1d8] sm:$0xff]
    %v88 = vld [vmem:[%s0 + $0x1e0] sm:$0xff]
    %v89 = vld [vmem:[%s0 + $0x1e8] sm:$0xff]
    %v90 = vld [vmem:[%s0 + $0x1f0] sm:$0xff]
    %v91 = vld [vmem:[%s0 + $0x1f8] sm:$0xff]
    %v92 = vld [vmem:[%s1] sm:$0xf]
    %v93 = vld [vmem:[%s1 + $0x4] sm:$0xf]
    %v94 = vld [vmem:[%s1 + $0x8] sm:$0xf]
    %v95 = vld [vmem:[%s1 + $0xc] sm:$0xf]
    %v96 = vld [vmem:[%s1 + $0x10] sm:$0xf]
    %v97 = vld [vmem:[%s1 + $0x14] sm:$0xf]
    %v98 = vld [vmem:[%s1 + $0x18] sm:$0xf]
    %v99 = vld [vmem:[%s1 + $0x1c] sm:$0xf]
    %v100 = vld [vmem:[%s1 + $0x20] sm:$0xf]
    %v101 = vld [vmem:[%s1 + $0x24] sm:$0xf]
    %v102 = vld [vmem:[%s1 + $0x28] sm:$0xf]
    %v103 = vld [vmem:[%s1 + $0x2c] sm:$0xf]
    %v104 = vld [vmem:[%s1 + $0x30] sm:$0xf]
    %v105 = vld [vmem:[%s1 + $0x34] sm:$0xf]
    %v106 = vld [vmem:[%s1 + $0x38] sm:$0xf]
    %v107 = vld [vmem:[%s1 + $0x3c] sm:$0xf]
    %v108 = vld [vmem:[%s1 + $0x40] sm:$0xf]
    %v109 = vld [vmem:[%s1 + $0x44] sm:$0xf]
    %v110 = vld [vmem:[%s1 + $0x48] sm:$0xf]
    %v111 = vld [vmem:[%s1 + $0x4c] sm:$0xf]
    %v112 = vld [vmem:[%s1 + $0x50] sm:$0xf]
    %v113 = vld [vmem:[%s1 + $0x54] sm:$0xf]
    %v114 = vld [vmem:[%s1 + $0x58] sm:$0xf]
    %v115 = vld [vmem:[%s1 + $0x5c] sm:$0xf]
    %v116 = vld [vmem:[%s1 + $0x60] sm:$0xf]
    %v117 = vld [vmem:[%s1 + $0x64] sm:$0xf]
    %v118 = vld [vmem:[%s1 + $0x68] sm:$0xf]
    %v119 = vld [vmem:[%s1 + $0x6c] sm:$0xf]
    %v120 = vld [vmem:[%s1 + $0x70] sm:$0xf]
    %v121 = vld [vmem:[%s1 + $0x74] sm:$0xf]
    %v122 = vld [vmem:[%s1 + $0x78] sm:$0xf]
    %v123 = vld [vmem:[%s1 + $0x7c] sm:$0xf]
    %v124 = vld [vmem:[%s1 + $0x80] sm:$0xf]
    %v125 = vld [vmem:[%s1 + $0x84] sm:$0xf]
    %v126 = vld [vmem:[%s1 + $0x88] sm:$0xf]
    %v127 = vld [vmem:[%s1 + $0x8c] sm:$0xf]
    %v128 = vld [vmem:[%s1 + $0x90] sm:$0xf]
    %v129 = vld [vmem:[%s1 + $0x94] sm:$0xf]
    %v130 = vld [vmem:[%s1 + $0x98] sm:$0xf]
    %v131 = vld [vmem:[%s1 + $0x9c] sm:$0xf]
    %v132 = vld [vmem:[%s1 + $0xa0] sm:$0xf]
    %v133 = vld [vmem:[%s1 + $0xa4] sm:$0xf]
    %v134 = vld [vmem:[%s1 + $0xa8] sm:$0xf]
    %v135 = vld [vmem:[%s1 + $0xac] sm:$0xf]
    %v136 = vld [vmem:[%s1 + $0xb0] sm:$0xf]
    %v137 = vld [vmem:[%s1 + $0xb4] sm:$0xf]
    %v138 = vld [vmem:[%s1 + $0xb8] sm:$0xf]
    %v139 = vld [vmem:[%s1 + $0xbc] sm:$0xf]
    %v140 = vld [vmem:[%s1 + $0xc0] sm:$0xf]
    %v141 = vld [vmem:[%s1 + $0xc4] sm:$0xf]
    %v142 = vld [vmem:[%s1 + $0xc8] sm:$0xf]
    %v143 = vld [vmem:[%s1 + $0xcc] sm:$0xf]
    %v144 = vld [vmem:[%s1 + $0xd0] sm:$0xf]
    %v145 = vld [vmem:[%s1 + $0xd4] sm:$0xf]
    %v146 = vld [vmem:[%s1 + $0xd8] sm:$0xf]
    %v147 = vld [vmem:[%s1 + $0xdc] sm:$0xf]
    %v148 = vld [vmem:[%s1 + $0xe0] sm:$0xf]
    %v149 = vld [vmem:[%s1 + $0xe4] sm:$0xf]
    %v150 = vld [vmem:[%s1 + $0xe8] sm:$0xf]
    %v151 = vld [vmem:[%s1 + $0xec] sm:$0xf]
    %v152 = vld [vmem:[%s1 + $0xf0] sm:$0xf]
    %v153 = vld [vmem:[%s1 + $0xf4] sm:$0xf]
    %v154 = vld [vmem:[%s1 + $0xf8] sm:$0xf]
    %v155 = vld [vmem:[%s1 + $0xfc] sm:$0xf]
    %v156 = vld [vmem:[%s1 + $0x100] sm:$0xf]
    %v157 = vld [vmem:[%s1 + $0x104] sm:$0xf]
    %v158 = vld [vmem:[%s1 + $0x108] sm:$0xf]
    %v159 = vld [vmem:[%s1 + $0x10c] sm:$0xf]
    %v160 = vld [vmem:[%s1 + $0x110] sm:$0xf]
    %v161 = vld [vmem:[%s1 + $0x114] sm:$0xf]
    %v162 = vld [vmem:[%s1 + $0x118] sm:$0xf]
    %v163 = vld [vmem:[%s1 + $0x11c] sm:$0xf]
    %v164 = vld [vmem:[%s1 + $0x120] sm:$0xf]
    %v165 = vld [vmem:[%s1 + $0x124] sm:$0xf]
    %v166 = vld [vmem:[%s1 + $0x128] sm:$0xf]
    %v167 = vld [vmem:[%s1 + $0x12c] sm:$0xf]
    %v168 = vld [vmem:[%s1 + $0x130] sm:$0xf]
    %v169 = vld [vmem:[%s1 + $0x134] sm:$0xf]
    %v170 = vld [vmem:[%s1 + $0x138] sm:$0xf]
    %v171 = vld [vmem:[%s1 + $0x13c] sm:$0xf]
    %v172 = vld [vmem:[%s1 + $0x140] sm:$0xf]
    %v173 = vld [vmem:[%s1 + $0x144] sm:$0xf]
    %v174 = vld [vmem:[%s1 + $0x148] sm:$0xf]
    %v175 = vld [vmem:[%s1 + $0x14c] sm:$0xf]
    %v176 = vld [vmem:[%s1 + $0x150] sm:$0xf]
    %v177 = vld [vmem:[%s1 + $0x154] sm:$0xf]
    %v178 = vld [vmem:[%s1 + $0x158] sm:$0xf]
    %v179 = vld [vmem:[%s1 + $0x15c] sm:$0xf]
    %v180 = vld [vmem:[%s1 + $0x160] sm:$0xf]
    %v181 = vld [vmem:[%s1 + $0x164] sm:$0xf]
    %v182 = vld [vmem:[%s1 + $0x168] sm:$0xf]
    %v183 = vld [vmem:[%s1 + $0x16c] sm:$0xf]
    %v184 = vld [vmem:[%s1 + $0x170] sm:$0xf]
    %v185 = vld [vmem:[%s1 + $0x174] sm:$0xf]
    %v186 = vld [vmem:[%s1 + $0x178] sm:$0xf]
    %v187 = vld [vmem:[%s1 + $0x17c] sm:$0xf]
    %v188 = vld [vmem:[%s1 + $0x180] sm:$0xf]
    %v189 = vld [vmem:[%s1 + $0x184] sm:$0xf]
    %v190 = vld [vmem:[%s1 + $0x188] sm:$0xf]
    %v191 = vld [vmem:[%s1 + $0x18c] sm:$0xf]
    %v192 = vld [vmem:[%s1 + $0x190] sm:$0xf]
    %v193 = vld [vmem:[%s1 + $0x194] sm:$0xf]
    %v194 = vld [vmem:[%s1 + $0x198] sm:$0xf]
    %v195 = vld [vmem:[%s1 + $0x19c] sm:$0xf]
    %v196 = vld [vmem:[%s1 + $0x1a0] sm:$0xf]
    %v197 = vld [vmem:[%s1 + $0x1a4] sm:$0xf]
    %v198 = vld [vmem:[%s1 + $0x1a8] sm:$0xf]
    %v199 = vld [vmem:[%s1 + $0x1ac] sm:$0xf]
    %v200 = vld [vmem:[%s1 + $0x1b0] sm:$0xf]
    %v201 = vld [vmem:[%s1 + $0x1b4] sm:$0xf]
    %v202 = vld [vmem:[%s1 + $0x1b8] sm:$0xf]
    %v203 = vld [vmem:[%s1 + $0x1bc] sm:$0xf]
    %v204 = vld [vmem:[%s1 + $0x1c0] sm:$0xf]
    %v205 = vld [vmem:[%s1 + $0x1c4] sm:$0xf]
    %v206 = vld [vmem:[%s1 + $0x1c8] sm:$0xf]
    %v207 = vld [vmem:[%s1 + $0x1cc] sm:$0xf]
    %v208 = vld [vmem:[%s1 + $0x1d0] sm:$0xf]
    %v209 = vld [vmem:[%s1 + $0x1d4] sm:$0xf]
    %v210 = vld [vmem:[%s1 + $0x1d8] sm:$0xf]
    %v211 = vld [vmem:[%s1 + $0x1dc] sm:$0xf]
    %v212 = vld [vmem:[%s1 + $0x1e0] sm:$0xf]
    %v213 = vld [vmem:[%s1 + $0x1e4] sm:$0xf]
    %v214 = vld [vmem:[%s1 + $0x1e8] sm:$0xf]
    %v215 = vld [vmem:[%s1 + $0x1ec] sm:$0xf]
    %v216 = vld [vmem:[%s1 + $0x1f0] sm:$0xf]
    %v217 = vld [vmem:[%s1 + $0x1f4] sm:$0xf]
    %v218 = vld [vmem:[%s1 + $0x1f8] sm:$0xf]
    %v219 = vld [vmem:[%s1 + $0x1fc] sm:$0xf]
    %v220 = vld [vmem:[%s2] sm:$0x1]
    %v222 = vperm.slane %v220, 0
    %v288 = vunpack.c.l.b16 %v28
    %v289 = vunpack.c.h.b16 %v28
    %v290 = vunpack.c.l.b16 %v29
    %v291 = vunpack.c.h.b16 %v29
    %v292 = vunpack.c.l.b16 %v30
    %v293 = vunpack.c.h.b16 %v30
    %v294 = vunpack.c.l.b16 %v31
    %v295 = vunpack.c.h.b16 %v31
    %v296 = vunpack.c.l.b16 %v32
    %v297 = vunpack.c.h.b16 %v32
    %v298 = vunpack.c.l.b16 %v33
    %v299 = vunpack.c.h.b16 %v33
    %v300 = vunpack.c.l.b16 %v34
    %v301 = vunpack.c.h.b16 %v34
    %v302 = vunpack.c.l.b16 %v35
    %v303 = vunpack.c.h.b16 %v35
    %v304 = vunpack.c.l.b16 %v36
    %v305 = vunpack.c.h.b16 %v36
    %v306 = vunpack.c.l.b16 %v37
    %v307 = vunpack.c.h.b16 %v37
    %v308 = vunpack.c.l.b16 %v38
    %v309 = vunpack.c.h.b16 %v38
    %v310 = vunpack.c.l.b16 %v39
    %v311 = vunpack.c.h.b16 %v39
    %v312 = vunpack.c.l.b16 %v40
    %v313 = vunpack.c.h.b16 %v40
    %v314 = vunpack.c.l.b16 %v41
    %v315 = vunpack.c.h.b16 %v41
    %v316 = vunpack.c.l.b16 %v42
    %v317 = vunpack.c.h.b16 %v42
    %v318 = vunpack.c.l.b16 %v43
    %v319 = vunpack.c.h.b16 %v43
    %v320 = vunpack.c.l.b16 %v44
    %v321 = vunpack.c.h.b16 %v44
    %v322 = vunpack.c.l.b16 %v45
    %v323 = vunpack.c.h.b16 %v45
    %v324 = vunpack.c.l.b16 %v46
    %v325 = vunpack.c.h.b16 %v46
    %v326 = vunpack.c.l.b16 %v47
    %v327 = vunpack.c.h.b16 %v47
    %v328 = vunpack.c.l.b16 %v48
    %v329 = vunpack.c.h.b16 %v48
    %v330 = vunpack.c.l.b16 %v49
    %v331 = vunpack.c.h.b16 %v49
    %v332 = vunpack.c.l.b16 %v50
    %v333 = vunpack.c.h.b16 %v50
    %v334 = vunpack.c.l.b16 %v51
    %v335 = vunpack.c.h.b16 %v51
    %v336 = vunpack.c.l.b16 %v52
    %v337 = vunpack.c.h.b16 %v52
    %v338 = vunpack.c.l.b16 %v53
    %v339 = vunpack.c.h.b16 %v53
    %v340 = vunpack.c.l.b16 %v54
    %v341 = vunpack.c.h.b16 %v54
    %v342 = vunpack.c.l.b16 %v55
    %v343 = vunpack.c.h.b16 %v55
    %v344 = vunpack.c.l.b16 %v56
    %v345 = vunpack.c.h.b16 %v56
    %v346 = vunpack.c.l.b16 %v57
    %v347 = vunpack.c.h.b16 %v57
    %v348 = vunpack.c.l.b16 %v58
    %v349 = vunpack.c.h.b16 %v58
    %v350 = vunpack.c.l.b16 %v59
    %v351 = vunpack.c.h.b16 %v59
    %v352 = vunpack.c.l.b16 %v60
    %v353 = vunpack.c.h.b16 %v60
    %v354 = vunpack.c.l.b16 %v61
    %v355 = vunpack.c.h.b16 %v61
    %v356 = vunpack.c.l.b16 %v62
    %v357 = vunpack.c.h.b16 %v62
    %v358 = vunpack.c.l.b16 %v63
    %v359 = vunpack.c.h.b16 %v63
    %v360 = vunpack.c.l.b16 %v64
    %v361 = vunpack.c.h.b16 %v64
    %v362 = vunpack.c.l.b16 %v65
    %v363 = vunpack.c.h.b16 %v65
    %v364 = vunpack.c.l.b16 %v66
    %v365 = vunpack.c.h.b16 %v66
    %v366 = vunpack.c.l.b16 %v67
    %v367 = vunpack.c.h.b16 %v67
    %v368 = vunpack.c.l.b16 %v68
    %v369 = vunpack.c.h.b16 %v68
    %v370 = vunpack.c.l.b16 %v69
    %v371 = vunpack.c.h.b16 %v69
    %v372 = vunpack.c.l.b16 %v70
    %v373 = vunpack.c.h.b16 %v70
    %v374 = vunpack.c.l.b16 %v71
    %v375 = vunpack.c.h.b16 %v71
    %v376 = vunpack.c.l.b16 %v72
    %v377 = vunpack.c.h.b16 %v72
    %v378 = vunpack.c.l.b16 %v73
    %v379 = vunpack.c.h.b16 %v73
    %v380 = vunpack.c.l.b16 %v74
    %v381 = vunpack.c.h.b16 %v74
    %v382 = vunpack.c.l.b16 %v75
    %v383 = vunpack.c.h.b16 %v75
    %v384 = vunpack.c.l.b16 %v76
    %v385 = vunpack.c.h.b16 %v76
    %v386 = vunpack.c.l.b16 %v77
    %v387 = vunpack.c.h.b16 %v77
    %v388 = vunpack.c.l.b16 %v78
    %v389 = vunpack.c.h.b16 %v78
    %v390 = vunpack.c.l.b16 %v79
    %v391 = vunpack.c.h.b16 %v79
    %v392 = vunpack.c.l.b16 %v80
    %v393 = vunpack.c.h.b16 %v80
    %v394 = vunpack.c.l.b16 %v81
    %v395 = vunpack.c.h.b16 %v81
    %v396 = vunpack.c.l.b16 %v82
    %v397 = vunpack.c.h.b16 %v82
    %v398 = vunpack.c.l.b16 %v83
    %v399 = vunpack.c.h.b16 %v83
    %v400 = vunpack.c.l.b16 %v84
    %v401 = vunpack.c.h.b16 %v84
    %v402 = vunpack.c.l.b16 %v85
    %v403 = vunpack.c.h.b16 %v85
    %v404 = vunpack.c.l.b16 %v86
    %v405 = vunpack.c.h.b16 %v86
    %v406 = vunpack.c.l.b16 %v87
    %v407 = vunpack.c.h.b16 %v87
    %v408 = vunpack.c.l.b16 %v88
    %v409 = vunpack.c.h.b16 %v88
    %v410 = vunpack.c.l.b16 %v89
    %v411 = vunpack.c.h.b16 %v89
    %v412 = vunpack.c.l.b16 %v90
    %v413 = vunpack.c.h.b16 %v90
    %v414 = vunpack.c.l.b16 %v91
    %v415 = vunpack.c.h.b16 %v91
    %v416 = vpack.c.b16 %v296, %v288
    %v417 = vpack.c.b16 %v297, %v289
    %v418 = vpack.c.b16 %v298, %v290
    %v419 = vpack.c.b16 %v299, %v291
    %v420 = vpack.c.b16 %v300, %v292
    %v421 = vpack.c.b16 %v301, %v293
    %v422 = vpack.c.b16 %v302, %v294
    %v423 = vpack.c.b16 %v303, %v295
    %v424 = vpack.c.b16 %v312, %v304
    %v425 = vpack.c.b16 %v313, %v305
    %v426 = vpack.c.b16 %v314, %v306
    %v427 = vpack.c.b16 %v315, %v307
    %v428 = vpack.c.b16 %v316, %v308
    %v429 = vpack.c.b16 %v317, %v309
    %v430 = vpack.c.b16 %v318, %v310
    %v431 = vpack.c.b16 %v319, %v311
    %v432 = vpack.c.b16 %v328, %v320
    %v433 = vpack.c.b16 %v329, %v321
    %v434 = vpack.c.b16 %v330, %v322
    %v435 = vpack.c.b16 %v331, %v323
    %v436 = vpack.c.b16 %v332, %v324
    %v437 = vpack.c.b16 %v333, %v325
    %v438 = vpack.c.b16 %v334, %v326
    %v439 = vpack.c.b16 %v335, %v327
    %v440 = vpack.c.b16 %v344, %v336
    %v441 = vpack.c.b16 %v345, %v337
    %v442 = vpack.c.b16 %v346, %v338
    %v443 = vpack.c.b16 %v347, %v339
    %v444 = vpack.c.b16 %v348, %v340
    %v445 = vpack.c.b16 %v349, %v341
    %v446 = vpack.c.b16 %v350, %v342
    %v447 = vpack.c.b16 %v351, %v343
    %v448 = vpack.c.b16 %v360, %v352
    %v449 = vpack.c.b16 %v361, %v353
    %v450 = vpack.c.b16 %v362, %v354
    %v451 = vpack.c.b16 %v363, %v355
    %v452 = vpack.c.b16 %v364, %v356
    %v453 = vpack.c.b16 %v365, %v357
    %v454 = vpack.c.b16 %v366, %v358
    %v455 = vpack.c.b16 %v367, %v359
    %v456 = vpack.c.b16 %v376, %v368
    %v457 = vpack.c.b16 %v377, %v369
    %v458 = vpack.c.b16 %v378, %v370
    %v459 = vpack.c.b16 %v379, %v371
    %v460 = vpack.c.b16 %v380, %v372
    %v461 = vpack.c.b16 %v381, %v373
    %v462 = vpack.c.b16 %v382, %v374
    %v463 = vpack.c.b16 %v383, %v375
    %v464 = vpack.c.b16 %v392, %v384
    %v465 = vpack.c.b16 %v393, %v385
    %v466 = vpack.c.b16 %v394, %v386
    %v467 = vpack.c.b16 %v395, %v387
    %v468 = vpack.c.b16 %v396, %v388
    %v469 = vpack.c.b16 %v397, %v389
    %v470 = vpack.c.b16 %v398, %v390
    %v471 = vpack.c.b16 %v399, %v391
    %v472 = vpack.c.b16 %v408, %v400
    %v473 = vpack.c.b16 %v409, %v401
    %v474 = vpack.c.b16 %v410, %v402
    %v475 = vpack.c.b16 %v411, %v403
    %v476 = vpack.c.b16 %v412, %v404
    %v477 = vpack.c.b16 %v413, %v405
    %v478 = vpack.c.b16 %v414, %v406
    %v479 = vpack.c.b16 %v415, %v407
    %v672 = vunpack.c.l.b16 %v92
    %v673 = vunpack.c.l.b16 %v93
    %v674 = vunpack.c.l.b16 %v94
    %v675 = vunpack.c.l.b16 %v95
    %v676 = vunpack.c.l.b16 %v96
    %v677 = vunpack.c.l.b16 %v97
    %v678 = vunpack.c.l.b16 %v98
    %v679 = vunpack.c.l.b16 %v99
    %v680 = vunpack.c.l.b16 %v100
    %v681 = vunpack.c.l.b16 %v101
    %v682 = vunpack.c.l.b16 %v102
    %v683 = vunpack.c.l.b16 %v103
    %v684 = vunpack.c.l.b16 %v104
    %v685 = vunpack.c.l.b16 %v105
    %v686 = vunpack.c.l.b16 %v106
    %v687 = vunpack.c.l.b16 %v107
    %v688 = vunpack.c.l.b16 %v108
    %v689 = vunpack.c.l.b16 %v109
    %v690 = vunpack.c.l.b16 %v110
    %v691 = vunpack.c.l.b16 %v111
    %v692 = vunpack.c.l.b16 %v112
    %v693 = vunpack.c.l.b16 %v113
    %v694 = vunpack.c.l.b16 %v114
    %v695 = vunpack.c.l.b16 %v115
    %v696 = vunpack.c.l.b16 %v116
    %v697 = vunpack.c.l.b16 %v117
    %v698 = vunpack.c.l.b16 %v118
    %v699 = vunpack.c.l.b16 %v119
    %v700 = vunpack.c.l.b16 %v120
    %v701 = vunpack.c.l.b16 %v121
    %v702 = vunpack.c.l.b16 %v122
    %v703 = vunpack.c.l.b16 %v123
    %v704 = vunpack.c.l.b16 %v124
    %v705 = vunpack.c.l.b16 %v125
    %v706 = vunpack.c.l.b16 %v126
    %v707 = vunpack.c.l.b16 %v127
    %v708 = vunpack.c.l.b16 %v128
    %v709 = vunpack.c.l.b16 %v129
    %v710 = vunpack.c.l.b16 %v130
    %v711 = vunpack.c.l.b16 %v131
    %v712 = vunpack.c.l.b16 %v132
    %v713 = vunpack.c.l.b16 %v133
    %v714 = vunpack.c.l.b16 %v134
    %v715 = vunpack.c.l.b16 %v135
    %v716 = vunpack.c.l.b16 %v136
    %v717 = vunpack.c.l.b16 %v137
    %v718 = vunpack.c.l.b16 %v138
    %v719 = vunpack.c.l.b16 %v139
    %v720 = vunpack.c.l.b16 %v140
    %v721 = vunpack.c.l.b16 %v141
    %v722 = vunpack.c.l.b16 %v142
    %v723 = vunpack.c.l.b16 %v143
    %v724 = vunpack.c.l.b16 %v144
    %v725 = vunpack.c.l.b16 %v145
    %v726 = vunpack.c.l.b16 %v146
    %v727 = vunpack.c.l.b16 %v147
    %v728 = vunpack.c.l.b16 %v148
    %v729 = vunpack.c.l.b16 %v149
    %v730 = vunpack.c.l.b16 %v150
    %v731 = vunpack.c.l.b16 %v151
    %v732 = vunpack.c.l.b16 %v152
    %v733 = vunpack.c.l.b16 %v153
    %v734 = vunpack.c.l.b16 %v154
    %v735 = vunpack.c.l.b16 %v155
    %v736 = vunpack.c.l.b16 %v156
    %v737 = vunpack.c.l.b16 %v157
    %v738 = vunpack.c.l.b16 %v158
    %v739 = vunpack.c.l.b16 %v159
    %v740 = vunpack.c.l.b16 %v160
    %v741 = vunpack.c.l.b16 %v161
    %v742 = vunpack.c.l.b16 %v162
    %v743 = vunpack.c.l.b16 %v163
    %v744 = vunpack.c.l.b16 %v164
    %v745 = vunpack.c.l.b16 %v165
    %v746 = vunpack.c.l.b16 %v166
    %v747 = vunpack.c.l.b16 %v167
    %v748 = vunpack.c.l.b16 %v168
    %v749 = vunpack.c.l.b16 %v169
    %v750 = vunpack.c.l.b16 %v170
    %v751 = vunpack.c.l.b16 %v171
    %v752 = vunpack.c.l.b16 %v172
    %v753 = vunpack.c.l.b16 %v173
    %v754 = vunpack.c.l.b16 %v174
    %v755 = vunpack.c.l.b16 %v175
    %v756 = vunpack.c.l.b16 %v176
    %v757 = vunpack.c.l.b16 %v177
    %v758 = vunpack.c.l.b16 %v178
    %v759 = vunpack.c.l.b16 %v179
    %v760 = vunpack.c.l.b16 %v180
    %v761 = vunpack.c.l.b16 %v181
    %v762 = vunpack.c.l.b16 %v182
    %v763 = vunpack.c.l.b16 %v183
    %v764 = vunpack.c.l.b16 %v184
    %v765 = vunpack.c.l.b16 %v185
    %v766 = vunpack.c.l.b16 %v186
    %v767 = vunpack.c.l.b16 %v187
    %v768 = vunpack.c.l.b16 %v188
    %v769 = vunpack.c.l.b16 %v189
    %v770 = vunpack.c.l.b16 %v190
    %v771 = vunpack.c.l.b16 %v191
    %v772 = vunpack.c.l.b16 %v192
    %v773 = vunpack.c.l.b16 %v193
    %v774 = vunpack.c.l.b16 %v194
    %v775 = vunpack.c.l.b16 %v195
    %v776 = vunpack.c.l.b16 %v196
    %v777 = vunpack.c.l.b16 %v197
    %v778 = vunpack.c.l.b16 %v198
    %v779 = vunpack.c.l.b16 %v199
    %v780 = vunpack.c.l.b16 %v200
    %v781 = vunpack.c.l.b16 %v201
    %v782 = vunpack.c.l.b16 %v202
    %v783 = vunpack.c.l.b16 %v203
    %v784 = vunpack.c.l.b16 %v204
    %v785 = vunpack.c.l.b16 %v205
    %v786 = vunpack.c.l.b16 %v206
    %v787 = vunpack.c.l.b16 %v207
    %v788 = vunpack.c.l.b16 %v208
    %v789 = vunpack.c.l.b16 %v209
    %v790 = vunpack.c.l.b16 %v210
    %v791 = vunpack.c.l.b16 %v211
    %v792 = vunpack.c.l.b16 %v212
    %v793 = vunpack.c.l.b16 %v213
    %v794 = vunpack.c.l.b16 %v214
    %v795 = vunpack.c.l.b16 %v215
    %v796 = vunpack.c.l.b16 %v216
    %v797 = vunpack.c.l.b16 %v217
    %v798 = vunpack.c.l.b16 %v218
    %v799 = vunpack.c.l.b16 %v219
    %v800 = vpack.c.b16 %v673, %v672
    %v801 = vpack.c.b16 %v675, %v674
    %v802 = vpack.c.b16 %v677, %v676
    %v803 = vpack.c.b16 %v679, %v678
    %v804 = vpack.c.b16 %v681, %v680
    %v805 = vpack.c.b16 %v683, %v682
    %v806 = vpack.c.b16 %v685, %v684
    %v807 = vpack.c.b16 %v687, %v686
    %v808 = vpack.c.b16 %v689, %v688
    %v809 = vpack.c.b16 %v691, %v690
    %v810 = vpack.c.b16 %v693, %v692
    %v811 = vpack.c.b16 %v695, %v694
    %v812 = vpack.c.b16 %v697, %v696
    %v813 = vpack.c.b16 %v699, %v698
    %v814 = vpack.c.b16 %v701, %v700
    %v815 = vpack.c.b16 %v703, %v702
    %v816 = vpack.c.b16 %v705, %v704
    %v817 = vpack.c.b16 %v707, %v706
    %v818 = vpack.c.b16 %v709, %v708
    %v819 = vpack.c.b16 %v711, %v710
    %v820 = vpack.c.b16 %v713, %v712
    %v821 = vpack.c.b16 %v715, %v714
    %v822 = vpack.c.b16 %v717, %v716
    %v823 = vpack.c.b16 %v719, %v718
    %v824 = vpack.c.b16 %v721, %v720
    %v825 = vpack.c.b16 %v723, %v722
    %v826 = vpack.c.b16 %v725, %v724
    %v827 = vpack.c.b16 %v727, %v726
    %v828 = vpack.c.b16 %v729, %v728
    %v829 = vpack.c.b16 %v731, %v730
    %v830 = vpack.c.b16 %v733, %v732
    %v831 = vpack.c.b16 %v735, %v734
    %v832 = vpack.c.b16 %v737, %v736
    %v833 = vpack.c.b16 %v739, %v738
    %v834 = vpack.c.b16 %v741, %v740
    %v835 = vpack.c.b16 %v743, %v742
    %v836 = vpack.c.b16 %v745, %v744
    %v837 = vpack.c.b16 %v747, %v746
    %v838 = vpack.c.b16 %v749, %v748
    %v839 = vpack.c.b16 %v751, %v750
    %v840 = vpack.c.b16 %v753, %v752
    %v841 = vpack.c.b16 %v755, %v754
    %v842 = vpack.c.b16 %v757, %v756
    %v843 = vpack.c.b16 %v759, %v758
    %v844 = vpack.c.b16 %v761, %v760
    %v845 = vpack.c.b16 %v763, %v762
    %v846 = vpack.c.b16 %v765, %v764
    %v847 = vpack.c.b16 %v767, %v766
    %v848 = vpack.c.b16 %v769, %v768
    %v849 = vpack.c.b16 %v771, %v770
    %v850 = vpack.c.b16 %v773, %v772
    %v851 = vpack.c.b16 %v775, %v774
    %v852 = vpack.c.b16 %v777, %v776
    %v853 = vpack.c.b16 %v779, %v778
    %v854 = vpack.c.b16 %v781, %v780
    %v855 = vpack.c.b16 %v783, %v782
    %v856 = vpack.c.b16 %v785, %v784
    %v857 = vpack.c.b16 %v787, %v786
    %v858 = vpack.c.b16 %v789, %v788
    %v859 = vpack.c.b16 %v791, %v790
    %v860 = vpack.c.b16 %v793, %v792
    %v861 = vpack.c.b16 %v795, %v794
    %v862 = vpack.c.b16 %v797, %v796
    %v863 = vpack.c.b16 %v799, %v798
    %928 = vmatpush.bf16.msra.mxu0 %v807
    %929 = vmatpush.bf16.msra.mxu0 %v806
    %930 = vmatpush.bf16.msra.mxu0 %v805
    %931 = vmatpush.bf16.msra.mxu0 %v804
    %932 = vmatpush.bf16.msra.mxu0 %v803
    %933 = vmatpush.bf16.msra.mxu0 %v802
    %934 = vmatpush.bf16.msra.mxu0 %v801
    %935 = vmatpush.bf16.msra.mxu0 %v800
    %936 = vmatmul.bf16.gmra.mxu0 %v416
    %v937 = vpop.f32.mrf.mxu0
    %v938 = vadd.f32 %v222, %v937
    %v939 = vpop.f32.mrf.mxu0
    %v940 = vadd.f32 %v222, %v939
    %941 = vmatmul.bf16.gmra.mxu0 %v424
    %v942 = vpop.f32.mrf.mxu0
    %v943 = vadd.f32 %v222, %v942
    %v944 = vpop.f32.mrf.mxu0
    %v945 = vadd.f32 %v222, %v944
    %946 = vmatmul.bf16.gmra.mxu0 %v432
    %v947 = vpop.f32.mrf.mxu0
    %v948 = vadd.f32 %v222, %v947
    %v949 = vpop.f32.mrf.mxu0
    %v950 = vadd.f32 %v222, %v949
    %951 = vmatmul.bf16.gmra.mxu0 %v440
    %v952 = vpop.f32.mrf.mxu0
    %v953 = vadd.f32 %v222, %v952
    %v954 = vpop.f32.mrf.mxu0
    %v955 = vadd.f32 %v222, %v954
    %956 = vmatmul.bf16.gmra.mxu0 %v448
    %v957 = vpop.f32.mrf.mxu0
    %v958 = vadd.f32 %v222, %v957
    %v959 = vpop.f32.mrf.mxu0
    %v960 = vadd.f32 %v222, %v959
    %961 = vmatmul.bf16.gmra.mxu0 %v456
    %v962 = vpop.f32.mrf.mxu0
    %v963 = vadd.f32 %v222, %v962
    %v964 = vpop.f32.mrf.mxu0
    %v965 = vadd.f32 %v222, %v964
    %966 = vmatmul.bf16.gmra.mxu0 %v464
    %v967 = vpop.f32.mrf.mxu0
    %v968 = vadd.f32 %v222, %v967
    %v969 = vpop.f32.mrf.mxu0
    %v970 = vadd.f32 %v222, %v969
    %971 = vmatmul.bf16.gmra.mxu0 %v472
    %v972 = vpop.f32.mrf.mxu0
    %v973 = vadd.f32 %v222, %v972
    %v974 = vpop.f32.mrf.mxu0
    %v975 = vadd.f32 %v222, %v974
    %976 = vdwg.mxu0
    %977 = vmatpush.bf16.msra.mxu0 %v815
    %978 = vmatpush.bf16.msra.mxu0 %v814
    %979 = vmatpush.bf16.msra.mxu0 %v813
    %980 = vmatpush.bf16.msra.mxu0 %v812
    %981 = vmatpush.bf16.msra.mxu0 %v811
    %982 = vmatpush.bf16.msra.mxu0 %v810
    %983 = vmatpush.bf16.msra.mxu0 %v809
    %984 = vmatpush.bf16.msra.mxu0 %v808
    %985 = vmatmul.bf16.gmra.mxu0 %v417
    %v986 = vpop.f32.mrf.mxu0
    %v987 = vadd.f32 %v938, %v986
    %v988 = vpop.f32.mrf.mxu0
    %v989 = vadd.f32 %v940, %v988
    %990 = vmatmul.bf16.gmra.mxu0 %v425
    %v991 = vpop.f32.mrf.mxu0
    %v992 = vadd.f32 %v943, %v991
    %v993 = vpop.f32.mrf.mxu0
    %v994 = vadd.f32 %v945, %v993
    %995 = vmatmul.bf16.gmra.mxu0 %v433
    %v996 = vpop.f32.mrf.mxu0
    %v997 = vadd.f32 %v948, %v996
    %v998 = vpop.f32.mrf.mxu0
    %v999 = vadd.f32 %v950, %v998
    %1000 = vmatmul.bf16.gmra.mxu0 %v441
    %v1001 = vpop.f32.mrf.mxu0
    %v1002 = vadd.f32 %v953, %v1001
    %v1003 = vpop.f32.mrf.mxu0
    %v1004 = vadd.f32 %v955, %v1003
    %1005 = vmatmul.bf16.gmra.mxu0 %v449
    %v1006 = vpop.f32.mrf.mxu0
    %v1007 = vadd.f32 %v958, %v1006
    %v1008 = vpop.f32.mrf.mxu0
    %v1009 = vadd.f32 %v960, %v1008
    %1010 = vmatmul.bf16.gmra.mxu0 %v457
    %v1011 = vpop.f32.mrf.mxu0
    %v1012 = vadd.f32 %v963, %v1011
    %v1013 = vpop.f32.mrf.mxu0
    %v1014 = vadd.f32 %v965, %v1013
    %1015 = vmatmul.bf16.gmra.mxu0 %v465
    %v1016 = vpop.f32.mrf.mxu0
    %v1017 = vadd.f32 %v968, %v1016
    %v1018 = vpop.f32.mrf.mxu0
    %v1019 = vadd.f32 %v970, %v1018
    %1020 = vmatmul.bf16.gmra.mxu0 %v473
    %v1021 = vpop.f32.mrf.mxu0
    %v1022 = vadd.f32 %v973, %v1021
    %v1023 = vpop.f32.mrf.mxu0
    %v1024 = vadd.f32 %v975, %v1023
    %1025 = vdwg.mxu0
    %1026 = vmatpush.bf16.msra.mxu0 %v823
    %1027 = vmatpush.bf16.msra.mxu0 %v822
    %1028 = vmatpush.bf16.msra.mxu0 %v821
    %1029 = vmatpush.bf16.msra.mxu0 %v820
    %1030 = vmatpush.bf16.msra.mxu0 %v819
    %1031 = vmatpush.bf16.msra.mxu0 %v818
    %1032 = vmatpush.bf16.msra.mxu0 %v817
    %1033 = vmatpush.bf16.msra.mxu0 %v816
    %1034 = vmatmul.bf16.gmra.mxu0 %v418
    %v1035 = vpop.f32.mrf.mxu0
    %v1036 = vadd.f32 %v987, %v1035
    %v1037 = vpop.f32.mrf.mxu0
    %v1038 = vadd.f32 %v989, %v1037
    %1039 = vmatmul.bf16.gmra.mxu0 %v426
    %v1040 = vpop.f32.mrf.mxu0
    %v1041 = vadd.f32 %v992, %v1040
    %v1042 = vpop.f32.mrf.mxu0
    %v1043 = vadd.f32 %v994, %v1042
    %1044 = vmatmul.bf16.gmra.mxu0 %v434
    %v1045 = vpop.f32.mrf.mxu0
    %v1046 = vadd.f32 %v997, %v1045
    %v1047 = vpop.f32.mrf.mxu0
    %v1048 = vadd.f32 %v999, %v1047
    %1049 = vmatmul.bf16.gmra.mxu0 %v442
    %v1050 = vpop.f32.mrf.mxu0
    %v1051 = vadd.f32 %v1002, %v1050
    %v1052 = vpop.f32.mrf.mxu0
    %v1053 = vadd.f32 %v1004, %v1052
    %1054 = vmatmul.bf16.gmra.mxu0 %v450
    %v1055 = vpop.f32.mrf.mxu0
    %v1056 = vadd.f32 %v1007, %v1055
    %v1057 = vpop.f32.mrf.mxu0
    %v1058 = vadd.f32 %v1009, %v1057
    %1059 = vmatmul.bf16.gmra.mxu0 %v458
    %v1060 = vpop.f32.mrf.mxu0
    %v1061 = vadd.f32 %v1012, %v1060
    %v1062 = vpop.f32.mrf.mxu0
    %v1063 = vadd.f32 %v1014, %v1062
    %1064 = vmatmul.bf16.gmra.mxu0 %v466
    %v1065 = vpop.f32.mrf.mxu0
    %v1066 = vadd.f32 %v1017, %v1065
    %v1067 = vpop.f32.mrf.mxu0
    %v1068 = vadd.f32 %v1019, %v1067
    %1069 = vmatmul.bf16.gmra.mxu0 %v474
    %v1070 = vpop.f32.mrf.mxu0
    %v1071 = vadd.f32 %v1022, %v1070
    %v1072 = vpop.f32.mrf.mxu0
    %v1073 = vadd.f32 %v1024, %v1072
    %1074 = vdwg.mxu0
    %1075 = vmatpush.bf16.msra.mxu0 %v831
    %1076 = vmatpush.bf16.msra.mxu0 %v830
    %1077 = vmatpush.bf16.msra.mxu0 %v829
    %1078 = vmatpush.bf16.msra.mxu0 %v828
    %1079 = vmatpush.bf16.msra.mxu0 %v827
    %1080 = vmatpush.bf16.msra.mxu0 %v826
    %1081 = vmatpush.bf16.msra.mxu0 %v825
    %1082 = vmatpush.bf16.msra.mxu0 %v824
    %1083 = vmatmul.bf16.gmra.mxu0 %v419
    %v1084 = vpop.f32.mrf.mxu0
    %v1085 = vadd.f32 %v1036, %v1084
    %v1086 = vpop.f32.mrf.mxu0
    %v1087 = vadd.f32 %v1038, %v1086
    %1088 = vmatmul.bf16.gmra.mxu0 %v427
    %v1089 = vpop.f32.mrf.mxu0
    %v1090 = vadd.f32 %v1041, %v1089
    %v1091 = vpop.f32.mrf.mxu0
    %v1092 = vadd.f32 %v1043, %v1091
    %1093 = vmatmul.bf16.gmra.mxu0 %v435
    %v1094 = vpop.f32.mrf.mxu0
    %v1095 = vadd.f32 %v1046, %v1094
    %v1096 = vpop.f32.mrf.mxu0
    %v1097 = vadd.f32 %v1048, %v1096
    %1098 = vmatmul.bf16.gmra.mxu0 %v443
    %v1099 = vpop.f32.mrf.mxu0
    %v1100 = vadd.f32 %v1051, %v1099
    %v1101 = vpop.f32.mrf.mxu0
    %v1102 = vadd.f32 %v1053, %v1101
    %1103 = vmatmul.bf16.gmra.mxu0 %v451
    %v1104 = vpop.f32.mrf.mxu0
    %v1105 = vadd.f32 %v1056, %v1104
    %v1106 = vpop.f32.mrf.mxu0
    %v1107 = vadd.f32 %v1058, %v1106
    %1108 = vmatmul.bf16.gmra.mxu0 %v459
    %v1109 = vpop.f32.mrf.mxu0
    %v1110 = vadd.f32 %v1061, %v1109
    %v1111 = vpop.f32.mrf.mxu0
    %v1112 = vadd.f32 %v1063, %v1111
    %1113 = vmatmul.bf16.gmra.mxu0 %v467
    %v1114 = vpop.f32.mrf.mxu0
    %v1115 = vadd.f32 %v1066, %v1114
    %v1116 = vpop.f32.mrf.mxu0
    %v1117 = vadd.f32 %v1068, %v1116
    %1118 = vmatmul.bf16.gmra.mxu0 %v475
    %v1119 = vpop.f32.mrf.mxu0
    %v1120 = vadd.f32 %v1071, %v1119
    %v1121 = vpop.f32.mrf.mxu0
    %v1122 = vadd.f32 %v1073, %v1121
    %1123 = vdwg.mxu0
    %1124 = vmatpush.bf16.msra.mxu0 %v839
    %1125 = vmatpush.bf16.msra.mxu0 %v838
    %1126 = vmatpush.bf16.msra.mxu0 %v837
    %1127 = vmatpush.bf16.msra.mxu0 %v836
    %1128 = vmatpush.bf16.msra.mxu0 %v835
    %1129 = vmatpush.bf16.msra.mxu0 %v834
    %1130 = vmatpush.bf16.msra.mxu0 %v833
    %1131 = vmatpush.bf16.msra.mxu0 %v832
    %1132 = vmatmul.bf16.gmra.mxu0 %v420
    %v1133 = vpop.f32.mrf.mxu0
    %v1134 = vadd.f32 %v1085, %v1133
    %v1135 = vpop.f32.mrf.mxu0
    %v1136 = vadd.f32 %v1087, %v1135
    %1137 = vmatmul.bf16.gmra.mxu0 %v428
    %v1138 = vpop.f32.mrf.mxu0
    %v1139 = vadd.f32 %v1090, %v1138
    %v1140 = vpop.f32.mrf.mxu0
    %v1141 = vadd.f32 %v1092, %v1140
    %1142 = vmatmul.bf16.gmra.mxu0 %v436
    %v1143 = vpop.f32.mrf.mxu0
    %v1144 = vadd.f32 %v1095, %v1143
    %v1145 = vpop.f32.mrf.mxu0
    %v1146 = vadd.f32 %v1097, %v1145
    %1147 = vmatmul.bf16.gmra.mxu0 %v444
    %v1148 = vpop.f32.mrf.mxu0
    %v1149 = vadd.f32 %v1100, %v1148
    %v1150 = vpop.f32.mrf.mxu0
    %v1151 = vadd.f32 %v1102, %v1150
    %1152 = vmatmul.bf16.gmra.mxu0 %v452
    %v1153 = vpop.f32.mrf.mxu0
    %v1154 = vadd.f32 %v1105, %v1153
    %v1155 = vpop.f32.mrf.mxu0
    %v1156 = vadd.f32 %v1107, %v1155
    %1157 = vmatmul.bf16.gmra.mxu0 %v460
    %v1158 = vpop.f32.mrf.mxu0
    %v1159 = vadd.f32 %v1110, %v1158
    %v1160 = vpop.f32.mrf.mxu0
    %v1161 = vadd.f32 %v1112, %v1160
    %1162 = vmatmul.bf16.gmra.mxu0 %v468
    %v1163 = vpop.f32.mrf.mxu0
    %v1164 = vadd.f32 %v1115, %v1163
    %v1165 = vpop.f32.mrf.mxu0
    %v1166 = vadd.f32 %v1117, %v1165
    %1167 = vmatmul.bf16.gmra.mxu0 %v476
    %v1168 = vpop.f32.mrf.mxu0
    %v1169 = vadd.f32 %v1120, %v1168
    %v1170 = vpop.f32.mrf.mxu0
    %v1171 = vadd.f32 %v1122, %v1170
    %1172 = vdwg.mxu0
    %1173 = vmatpush.bf16.msra.mxu0 %v847
    %1174 = vmatpush.bf16.msra.mxu0 %v846
    %1175 = vmatpush.bf16.msra.mxu0 %v845
    %1176 = vmatpush.bf16.msra.mxu0 %v844
    %1177 = vmatpush.bf16.msra.mxu0 %v843
    %1178 = vmatpush.bf16.msra.mxu0 %v842
    %1179 = vmatpush.bf16.msra.mxu0 %v841
    %1180 = vmatpush.bf16.msra.mxu0 %v840
    %1181 = vmatmul.bf16.gmra.mxu0 %v421
    %v1182 = vpop.f32.mrf.mxu0
    %v1183 = vadd.f32 %v1134, %v1182
    %v1184 = vpop.f32.mrf.mxu0
    %v1185 = vadd.f32 %v1136, %v1184
    %1186 = vmatmul.bf16.gmra.mxu0 %v429
    %v1187 = vpop.f32.mrf.mxu0
    %v1188 = vadd.f32 %v1139, %v1187
    %v1189 = vpop.f32.mrf.mxu0
    %v1190 = vadd.f32 %v1141, %v1189
    %1191 = vmatmul.bf16.gmra.mxu0 %v437
    %v1192 = vpop.f32.mrf.mxu0
    %v1193 = vadd.f32 %v1144, %v1192
    %v1194 = vpop.f32.mrf.mxu0
    %v1195 = vadd.f32 %v1146, %v1194
    %1196 = vmatmul.bf16.gmra.mxu0 %v445
    %v1197 = vpop.f32.mrf.mxu0
    %v1198 = vadd.f32 %v1149, %v1197
    %v1199 = vpop.f32.mrf.mxu0
    %v1200 = vadd.f32 %v1151, %v1199
    %1201 = vmatmul.bf16.gmra.mxu0 %v453
    %v1202 = vpop.f32.mrf.mxu0
    %v1203 = vadd.f32 %v1154, %v1202
    %v1204 = vpop.f32.mrf.mxu0
    %v1205 = vadd.f32 %v1156, %v1204
    %1206 = vmatmul.bf16.gmra.mxu0 %v461
    %v1207 = vpop.f32.mrf.mxu0
    %v1208 = vadd.f32 %v1159, %v1207
    %v1209 = vpop.f32.mrf.mxu0
    %v1210 = vadd.f32 %v1161, %v1209
    %1211 = vmatmul.bf16.gmra.mxu0 %v469
    %v1212 = vpop.f32.mrf.mxu0
    %v1213 = vadd.f32 %v1164, %v1212
    %v1214 = vpop.f32.mrf.mxu0
    %v1215 = vadd.f32 %v1166, %v1214
    %1216 = vmatmul.bf16.gmra.mxu0 %v477
    %v1217 = vpop.f32.mrf.mxu0
    %v1218 = vadd.f32 %v1169, %v1217
    %v1219 = vpop.f32.mrf.mxu0
    %v1220 = vadd.f32 %v1171, %v1219
    %1221 = vdwg.mxu0
    %1222 = vmatpush.bf16.msra.mxu0 %v855
    %1223 = vmatpush.bf16.msra.mxu0 %v854
    %1224 = vmatpush.bf16.msra.mxu0 %v853
    %1225 = vmatpush.bf16.msra.mxu0 %v852
    %1226 = vmatpush.bf16.msra.mxu0 %v851
    %1227 = vmatpush.bf16.msra.mxu0 %v850
    %1228 = vmatpush.bf16.msra.mxu0 %v849
    %1229 = vmatpush.bf16.msra.mxu0 %v848
    %1230 = vmatmul.bf16.gmra.mxu0 %v422
    %v1231 = vpop.f32.mrf.mxu0
    %v1232 = vadd.f32 %v1183, %v1231
    %v1233 = vpop.f32.mrf.mxu0
    %v1234 = vadd.f32 %v1185, %v1233
    %1235 = vmatmul.bf16.gmra.mxu0 %v430
    %v1236 = vpop.f32.mrf.mxu0
    %v1237 = vadd.f32 %v1188, %v1236
    %v1238 = vpop.f32.mrf.mxu0
    %v1239 = vadd.f32 %v1190, %v1238
    %1240 = vmatmul.bf16.gmra.mxu0 %v438
    %v1241 = vpop.f32.mrf.mxu0
    %v1242 = vadd.f32 %v1193, %v1241
    %v1243 = vpop.f32.mrf.mxu0
    %v1244 = vadd.f32 %v1195, %v1243
    %1245 = vmatmul.bf16.gmra.mxu0 %v446
    %v1246 = vpop.f32.mrf.mxu0
    %v1247 = vadd.f32 %v1198, %v1246
    %v1248 = vpop.f32.mrf.mxu0
    %v1249 = vadd.f32 %v1200, %v1248
    %1250 = vmatmul.bf16.gmra.mxu0 %v454
    %v1251 = vpop.f32.mrf.mxu0
    %v1252 = vadd.f32 %v1203, %v1251
    %v1253 = vpop.f32.mrf.mxu0
    %v1254 = vadd.f32 %v1205, %v1253
    %1255 = vmatmul.bf16.gmra.mxu0 %v462
    %v1256 = vpop.f32.mrf.mxu0
    %v1257 = vadd.f32 %v1208, %v1256
    %v1258 = vpop.f32.mrf.mxu0
    %v1259 = vadd.f32 %v1210, %v1258
    %1260 = vmatmul.bf16.gmra.mxu0 %v470
    %v1261 = vpop.f32.mrf.mxu0
    %v1262 = vadd.f32 %v1213, %v1261
    %v1263 = vpop.f32.mrf.mxu0
    %v1264 = vadd.f32 %v1215, %v1263
    %1265 = vmatmul.bf16.gmra.mxu0 %v478
    %v1266 = vpop.f32.mrf.mxu0
    %v1267 = vadd.f32 %v1218, %v1266
    %v1268 = vpop.f32.mrf.mxu0
    %v1269 = vadd.f32 %v1220, %v1268
    %1270 = vdwg.mxu0
    %1271 = vmatpush.bf16.msra.mxu0 %v863
    %1272 = vmatpush.bf16.msra.mxu0 %v862
    %1273 = vmatpush.bf16.msra.mxu0 %v861
    %1274 = vmatpush.bf16.msra.mxu0 %v860
    %1275 = vmatpush.bf16.msra.mxu0 %v859
    %1276 = vmatpush.bf16.msra.mxu0 %v858
    %1277 = vmatpush.bf16.msra.mxu0 %v857
    %1278 = vmatpush.bf16.msra.mxu0 %v856
    %1279 = vmatmul.bf16.gmra.mxu0 %v423
    %v1280 = vpop.f32.mrf.mxu0
    %v1281 = vadd.f32 %v1232, %v1280
    %v1282 = vpop.f32.mrf.mxu0
    %v1283 = vadd.f32 %v1234, %v1282
    %1284 = vmatmul.bf16.gmra.mxu0 %v431
    %v1285 = vpop.f32.mrf.mxu0
    %v1286 = vadd.f32 %v1237, %v1285
    %v1287 = vpop.f32.mrf.mxu0
    %v1288 = vadd.f32 %v1239, %v1287
    %1289 = vmatmul.bf16.gmra.mxu0 %v439
    %v1290 = vpop.f32.mrf.mxu0
    %v1291 = vadd.f32 %v1242, %v1290
    %v1292 = vpop.f32.mrf.mxu0
    %v1293 = vadd.f32 %v1244, %v1292
    %1294 = vmatmul.bf16.gmra.mxu0 %v447
    %v1295 = vpop.f32.mrf.mxu0
    %v1296 = vadd.f32 %v1247, %v1295
    %v1297 = vpop.f32.mrf.mxu0
    %v1298 = vadd.f32 %v1249, %v1297
    %1299 = vmatmul.bf16.gmra.mxu0 %v455
    %v1300 = vpop.f32.mrf.mxu0
    %v1301 = vadd.f32 %v1252, %v1300
    %v1302 = vpop.f32.mrf.mxu0
    %v1303 = vadd.f32 %v1254, %v1302
    %1304 = vmatmul.bf16.gmra.mxu0 %v463
    %v1305 = vpop.f32.mrf.mxu0
    %v1306 = vadd.f32 %v1257, %v1305
    %v1307 = vpop.f32.mrf.mxu0
    %v1308 = vadd.f32 %v1259, %v1307
    %1309 = vmatmul.bf16.gmra.mxu0 %v471
    %v1310 = vpop.f32.mrf.mxu0
    %v1311 = vadd.f32 %v1262, %v1310
    %v1312 = vpop.f32.mrf.mxu0
    %v1313 = vadd.f32 %v1264, %v1312
    %1314 = vmatmul.bf16.gmra.mxu0 %v479
    %v1315 = vpop.f32.mrf.mxu0
    %v1316 = vadd.f32 %v1267, %v1315
    %v1317 = vpop.f32.mrf.mxu0
    %v1318 = vadd.f32 %v1269, %v1317
    %1319 = vdwg.mxu0
    %v1320 = vmax.f32 %v1281, 0.0
    %v1321 = vmax.f32 %v1283, 0.0
    %v1322 = vmax.f32 %v1286, 0.0
    %v1323 = vmax.f32 %v1288, 0.0
    %v1324 = vmax.f32 %v1291, 0.0
    %v1325 = vmax.f32 %v1293, 0.0
    %v1326 = vmax.f32 %v1296, 0.0
    %v1327 = vmax.f32 %v1298, 0.0
    %v1328 = vmax.f32 %v1301, 0.0
    %v1329 = vmax.f32 %v1303, 0.0
    %v1330 = vmax.f32 %v1306, 0.0
    %v1331 = vmax.f32 %v1308, 0.0
    %v1332 = vmax.f32 %v1311, 0.0
    %v1333 = vmax.f32 %v1313, 0.0
    %v1334 = vmax.f32 %v1316, 0.0
    %v1335 = vmax.f32 %v1318, 0.0
    %v1336 = vpack.c.bf16 %v1321, %v1320
    %v1337 = vpack.c.bf16 %v1323, %v1322
    %v1338 = vpack.c.bf16 %v1325, %v1324
    %v1339 = vpack.c.bf16 %v1327, %v1326
    %v1340 = vpack.c.bf16 %v1329, %v1328
    %v1341 = vpack.c.bf16 %v1331, %v1330
    %v1342 = vpack.c.bf16 %v1333, %v1332
    %v1343 = vpack.c.bf16 %v1335, %v1334
    %v1344 = vld [vmem:[%s3] sm:$0xf]
    %v1345 = vld [vmem:[%s3 + $0x4] sm:$0xf]
    %v1346 = vld [vmem:[%s3 + $0x8] sm:$0xf]
    %v1347 = vld [vmem:[%s3 + $0xc] sm:$0xf]
    %v1348 = vld [vmem:[%s3 + $0x10] sm:$0xf]
    %v1349 = vld [vmem:[%s3 + $0x14] sm:$0xf]
    %v1350 = vld [vmem:[%s3 + $0x18] sm:$0xf]
    %v1351 = vld [vmem:[%s3 + $0x1c] sm:$0xf]
    %v1352 = vld [vmem:[%s4] sm:$0x1]
    %v1354 = vperm.slane %v1352, 0
    %v1364 = vunpack.c.l.b16 %v1344
    %v1365 = vunpack.c.l.b16 %v1345
    %v1366 = vunpack.c.l.b16 %v1346
    %v1367 = vunpack.c.l.b16 %v1347
    %v1368 = vunpack.c.l.b16 %v1348
    %v1369 = vunpack.c.l.b16 %v1349
    %v1370 = vunpack.c.l.b16 %v1350
    %v1371 = vunpack.c.l.b16 %v1351
    %v1372 = vpack.c.b16 %v1365, %v1364
    %v1373 = vpack.c.b16 %v1367, %v1366
    %v1374 = vpack.c.b16 %v1369, %v1368
    %v1375 = vpack.c.b16 %v1371, %v1370
    %vm1380 = vcmask 523264
    %v1382 = vsel %vm1380, %v1336, 0
    %v1385 = vsel %vm1380, %v1337, 0
    %v1388 = vsel %vm1380, %v1338, 0
    %v1391 = vsel %vm1380, %v1339, 0
    %v1394 = vsel %vm1380, %v1340, 0
    %v1397 = vsel %vm1380, %v1341, 0
    %v1400 = vsel %vm1380, %v1342, 0
    %v1403 = vsel %vm1380, %v1343, 0
    %1405 = vmatpush.bf16.msra.mxu0 0
    %1406 = vmatpush.bf16.msra.mxu0 0
    %1407 = vmatpush.bf16.msra.mxu0 0
    %1408 = vmatpush.bf16.msra.mxu0 0
    %1409 = vmatpush.bf16.msra.mxu0 %v1375
    %1410 = vmatpush.bf16.msra.mxu0 %v1374
    %1411 = vmatpush.bf16.msra.mxu0 %v1373
    %1412 = vmatpush.bf16.msra.mxu0 %v1372
    %1413 = vmatmul.bf16.gmra.mxu0 %v1382
    %v1414 = vpop.f32.mrf.mxu0
    %v1415 = vadd.f32 %v1354, %v1414
    %v1416 = vpop.f32.mrf.mxu0
    %v1417 = vadd.f32 %v1354, %v1416
    %1418 = vmatmul.bf16.gmra.mxu0 %v1385
    %v1419 = vpop.f32.mrf.mxu0
    %v1420 = vadd.f32 %v1354, %v1419
    %v1421 = vpop.f32.mrf.mxu0
    %v1422 = vadd.f32 %v1354, %v1421
    %1423 = vmatmul.bf16.gmra.mxu0 %v1388
    %v1424 = vpop.f32.mrf.mxu0
    %v1425 = vadd.f32 %v1354, %v1424
    %v1426 = vpop.f32.mrf.mxu0
    %v1427 = vadd.f32 %v1354, %v1426
    %1428 = vmatmul.bf16.gmra.mxu0 %v1391
    %v1429 = vpop.f32.mrf.mxu0
    %v1430 = vadd.f32 %v1354, %v1429
    %v1431 = vpop.f32.mrf.mxu0
    %v1432 = vadd.f32 %v1354, %v1431
    %1433 = vmatmul.bf16.gmra.mxu0 %v1394
    %v1434 = vpop.f32.mrf.mxu0
    %v1435 = vadd.f32 %v1354, %v1434
    %v1436 = vpop.f32.mrf.mxu0
    %v1437 = vadd.f32 %v1354, %v1436
    %1438 = vmatmul.bf16.gmra.mxu0 %v1397
    %v1439 = vpop.f32.mrf.mxu0
    %v1440 = vadd.f32 %v1354, %v1439
    %v1441 = vpop.f32.mrf.mxu0
    %v1442 = vadd.f32 %v1354, %v1441
    %1443 = vmatmul.bf16.gmra.mxu0 %v1400
    %v1444 = vpop.f32.mrf.mxu0
    %v1445 = vadd.f32 %v1354, %v1444
    %v1446 = vpop.f32.mrf.mxu0
    %v1447 = vadd.f32 %v1354, %v1446
    %1448 = vmatmul.bf16.gmra.mxu0 %v1403
    %v1449 = vpop.f32.mrf.mxu0
    %v1450 = vadd.f32 %v1354, %v1449
    %v1451 = vpop.f32.mrf.mxu0
    %v1452 = vadd.f32 %v1354, %v1451
    %1453 = vdwg.mxu0
    %v1454 = vmax.f32 %v1415, 0.0
    %v1455 = vmax.f32 %v1417, 0.0
    %v1456 = vmax.f32 %v1420, 0.0
    %v1457 = vmax.f32 %v1422, 0.0
    %v1458 = vmax.f32 %v1425, 0.0
    %v1459 = vmax.f32 %v1427, 0.0
    %v1460 = vmax.f32 %v1430, 0.0
    %v1461 = vmax.f32 %v1432, 0.0
    %v1462 = vmax.f32 %v1435, 0.0
    %v1463 = vmax.f32 %v1437, 0.0
    %v1464 = vmax.f32 %v1440, 0.0
    %v1465 = vmax.f32 %v1442, 0.0
    %v1466 = vmax.f32 %v1445, 0.0
    %v1467 = vmax.f32 %v1447, 0.0
    %v1468 = vmax.f32 %v1450, 0.0
    %v1469 = vmax.f32 %v1452, 0.0
    %v1470 = vpack.c.bf16 %v1455, %v1454
    %v1471 = vpack.c.bf16 %v1457, %v1456
    %v1472 = vpack.c.bf16 %v1459, %v1458
    %v1473 = vpack.c.bf16 %v1461, %v1460
    %v1474 = vpack.c.bf16 %v1463, %v1462
    %v1475 = vpack.c.bf16 %v1465, %v1464
    %v1476 = vpack.c.bf16 %v1467, %v1466
    %v1477 = vpack.c.bf16 %v1469, %v1468
    %v1478 = vld [vmem:[%s5] sm:$0xf]
    %v1479 = vld [vmem:[%s5 + $0x4] sm:$0xf]
    %v1480 = vld [vmem:[%s5 + $0x8] sm:$0xf]
    %v1481 = vld [vmem:[%s5 + $0xc] sm:$0xf]
    %v1482 = vld [vmem:[%s6] sm:$0x1]
    %v1484 = vperm.slane %v1482, 0
    %v1490 = vunpack.c.l.b16 %v1478
    %v1491 = vunpack.c.l.b16 %v1479
    %v1492 = vunpack.c.l.b16 %v1480
    %v1493 = vunpack.c.l.b16 %v1481
    %v1494 = vpack.c.b16 %v1491, %v1490
    %v1495 = vpack.c.b16 %v1493, %v1492
    %vm1498 = vcmask 261120
    %v1500 = vsel %vm1498, %v1470, 0
    %v1503 = vsel %vm1498, %v1471, 0
    %v1506 = vsel %vm1498, %v1472, 0
    %v1509 = vsel %vm1498, %v1473, 0
    %v1512 = vsel %vm1498, %v1474, 0
    %v1515 = vsel %vm1498, %v1475, 0
    %v1518 = vsel %vm1498, %v1476, 0
    %v1521 = vsel %vm1498, %v1477, 0
    %1523 = vmatpush.bf16.msra.mxu0 0
    %1524 = vmatpush.bf16.msra.mxu0 0
    %1525 = vmatpush.bf16.msra.mxu0 0
    %1526 = vmatpush.bf16.msra.mxu0 0
    %1527 = vmatpush.bf16.msra.mxu0 0
    %1528 = vmatpush.bf16.msra.mxu0 0
    %1529 = vmatpush.bf16.msra.mxu0 %v1495
    %1530 = vmatpush.bf16.msra.mxu0 %v1494
    %1531 = vmatmul.bf16.gmra.mxu0 %v1500
    %v1532 = vpop.f32.mrf.mxu0
    %v1533 = vadd.f32 %v1484, %v1532
    %v1534 = vpop.f32.mrf.mxu0
    %v1535 = vadd.f32 %v1484, %v1534
    %1536 = vmatmul.bf16.gmra.mxu0 %v1503
    %v1537 = vpop.f32.mrf.mxu0
    %v1538 = vadd.f32 %v1484, %v1537
    %v1539 = vpop.f32.mrf.mxu0
    %v1540 = vadd.f32 %v1484, %v1539
    %1541 = vmatmul.bf16.gmra.mxu0 %v1506
    %v1542 = vpop.f32.mrf.mxu0
    %v1543 = vadd.f32 %v1484, %v1542
    %v1544 = vpop.f32.mrf.mxu0
    %v1545 = vadd.f32 %v1484, %v1544
    %1546 = vmatmul.bf16.gmra.mxu0 %v1509
    %v1547 = vpop.f32.mrf.mxu0
    %v1548 = vadd.f32 %v1484, %v1547
    %v1549 = vpop.f32.mrf.mxu0
    %v1550 = vadd.f32 %v1484, %v1549
    %1551 = vmatmul.bf16.gmra.mxu0 %v1512
    %v1552 = vpop.f32.mrf.mxu0
    %v1553 = vadd.f32 %v1484, %v1552
    %v1554 = vpop.f32.mrf.mxu0
    %v1555 = vadd.f32 %v1484, %v1554
    %1556 = vmatmul.bf16.gmra.mxu0 %v1515
    %v1557 = vpop.f32.mrf.mxu0
    %v1558 = vadd.f32 %v1484, %v1557
    %v1559 = vpop.f32.mrf.mxu0
    %v1560 = vadd.f32 %v1484, %v1559
    %1561 = vmatmul.bf16.gmra.mxu0 %v1518
    %v1562 = vpop.f32.mrf.mxu0
    %v1563 = vadd.f32 %v1484, %v1562
    %v1564 = vpop.f32.mrf.mxu0
    %v1565 = vadd.f32 %v1484, %v1564
    %1566 = vmatmul.bf16.gmra.mxu0 %v1521
    %v1567 = vpop.f32.mrf.mxu0
    %v1568 = vadd.f32 %v1484, %v1567
    %v1569 = vpop.f32.mrf.mxu0
    %v1570 = vadd.f32 %v1484, %v1569
    %1571 = vdwg.mxu0
    %v1572 = vlaneseq
    %v1573 = vand.u32 %v1572, 127
    %vm1574 = vcmp.lt.s32.totalorder %v1573, 8
    %v1575 = vsel %vm1574, %v1533, -1e+30
    %v1576 = vsel %vm1574, %v1535, -1e+30
    %v1577 = vsel %vm1574, %v1538, -1e+30
    %v1578 = vsel %vm1574, %v1540, -1e+30
    %v1579 = vsel %vm1574, %v1543, -1e+30
    %v1580 = vsel %vm1574, %v1545, -1e+30
    %v1581 = vsel %vm1574, %v1548, -1e+30
    %v1582 = vsel %vm1574, %v1550, -1e+30
    %v1583 = vsel %vm1574, %v1553, -1e+30
    %v1584 = vsel %vm1574, %v1555, -1e+30
    %v1585 = vsel %vm1574, %v1558, -1e+30
    %v1586 = vsel %vm1574, %v1560, -1e+30
    %v1587 = vsel %vm1574, %v1563, -1e+30
    %v1588 = vsel %vm1574, %v1565, -1e+30
    %v1589 = vsel %vm1574, %v1568, -1e+30
    %v1590 = vsel %vm1574, %v1570, -1e+30
    %1591 = vmax.xlane.f32.xlu0 %v1575
    %v1592 = vpop.xlane.xlu0 %1591
    %1593 = vmax.xlane.f32.xlu0 %v1576
    %v1594 = vpop.xlane.xlu0 %1593
    %1595 = vmax.xlane.f32.xlu0 %v1577
    %v1596 = vpop.xlane.xlu0 %1595
    %1597 = vmax.xlane.f32.xlu0 %v1578
    %v1598 = vpop.xlane.xlu0 %1597
    %1599 = vmax.xlane.f32.xlu0 %v1579
    %v1600 = vpop.xlane.xlu0 %1599
    %1601 = vmax.xlane.f32.xlu0 %v1580
    %v1602 = vpop.xlane.xlu0 %1601
    %1603 = vmax.xlane.f32.xlu0 %v1581
    %v1604 = vpop.xlane.xlu0 %1603
    %1605 = vmax.xlane.f32.xlu0 %v1582
    %v1606 = vpop.xlane.xlu0 %1605
    %1607 = vmax.xlane.f32.xlu0 %v1583
    %v1608 = vpop.xlane.xlu0 %1607
    %1609 = vmax.xlane.f32.xlu0 %v1584
    %v1610 = vpop.xlane.xlu0 %1609
    %1611 = vmax.xlane.f32.xlu0 %v1585
    %v1612 = vpop.xlane.xlu0 %1611
    %1613 = vmax.xlane.f32.xlu0 %v1586
    %v1614 = vpop.xlane.xlu0 %1613
    %1615 = vmax.xlane.f32.xlu0 %v1587
    %v1616 = vpop.xlane.xlu0 %1615
    %1617 = vmax.xlane.f32.xlu0 %v1588
    %v1618 = vpop.xlane.xlu0 %1617
    %1619 = vmax.xlane.f32.xlu0 %v1589
    %v1620 = vpop.xlane.xlu0 %1619
    %1621 = vmax.xlane.f32.xlu0 %v1590
    %v1622 = vpop.xlane.xlu0 %1621
    %v1623 = vsub.f32 %v1575, %v1592
    %v1624 = vsub.f32 %v1576, %v1594
    %v1625 = vsub.f32 %v1577, %v1596
    %v1626 = vsub.f32 %v1578, %v1598
    %v1627 = vsub.f32 %v1579, %v1600
    %v1628 = vsub.f32 %v1580, %v1602
    %v1629 = vsub.f32 %v1581, %v1604
    %v1630 = vsub.f32 %v1582, %v1606
    %v1631 = vsub.f32 %v1583, %v1608
    %v1632 = vsub.f32 %v1584, %v1610
    %v1633 = vsub.f32 %v1585, %v1612
    %v1634 = vsub.f32 %v1586, %v1614
    %v1635 = vsub.f32 %v1587, %v1616
    %v1636 = vsub.f32 %v1588, %v1618
    %v1637 = vsub.f32 %v1589, %v1620
    %v1638 = vsub.f32 %v1590, %v1622
    %v1639 = vmul.f32 %v1623, 1.442695
    %v1640 = vpow.pop %v1639
    %v1641 = vmul.f32 %v1624, 1.442695
    %v1642 = vpow.pop %v1641
    %v1643 = vmul.f32 %v1625, 1.442695
    %v1644 = vpow.pop %v1643
    %v1645 = vmul.f32 %v1626, 1.442695
    %v1646 = vpow.pop %v1645
    %v1647 = vmul.f32 %v1627, 1.442695
    %v1648 = vpow.pop %v1647
    %v1649 = vmul.f32 %v1628, 1.442695
    %v1650 = vpow.pop %v1649
    %v1651 = vmul.f32 %v1629, 1.442695
    %v1652 = vpow.pop %v1651
    %v1653 = vmul.f32 %v1630, 1.442695
    %v1654 = vpow.pop %v1653
    %v1655 = vmul.f32 %v1631, 1.442695
    %v1656 = vpow.pop %v1655
    %v1657 = vmul.f32 %v1632, 1.442695
    %v1658 = vpow.pop %v1657
    %v1659 = vmul.f32 %v1633, 1.442695
    %v1660 = vpow.pop %v1659
    %v1661 = vmul.f32 %v1634, 1.442695
    %v1662 = vpow.pop %v1661
    %v1663 = vmul.f32 %v1635, 1.442695
    %v1664 = vpow.pop %v1663
    %v1665 = vmul.f32 %v1636, 1.442695
    %v1666 = vpow.pop %v1665
    %v1667 = vmul.f32 %v1637, 1.442695
    %v1668 = vpow.pop %v1667
    %v1669 = vmul.f32 %v1638, 1.442695
    %v1670 = vpow.pop %v1669
    %1671 = vadd.xlane.f32.xlu0 %v1640
    %v1672 = vpop.xlane.xlu0 %1671
    %1673 = vadd.xlane.f32.xlu0 %v1642
    %v1674 = vpop.xlane.xlu0 %1673
    %1675 = vadd.xlane.f32.xlu0 %v1644
    %v1676 = vpop.xlane.xlu0 %1675
    %1677 = vadd.xlane.f32.xlu0 %v1646
    %v1678 = vpop.xlane.xlu0 %1677
    %1679 = vadd.xlane.f32.xlu0 %v1648
    %v1680 = vpop.xlane.xlu0 %1679
    %1681 = vadd.xlane.f32.xlu0 %v1650
    %v1682 = vpop.xlane.xlu0 %1681
    %1683 = vadd.xlane.f32.xlu0 %v1652
    %v1684 = vpop.xlane.xlu0 %1683
    %1685 = vadd.xlane.f32.xlu0 %v1654
    %v1686 = vpop.xlane.xlu0 %1685
    %1687 = vadd.xlane.f32.xlu0 %v1656
    %v1688 = vpop.xlane.xlu0 %1687
    %1689 = vadd.xlane.f32.xlu0 %v1658
    %v1690 = vpop.xlane.xlu0 %1689
    %1691 = vadd.xlane.f32.xlu0 %v1660
    %v1692 = vpop.xlane.xlu0 %1691
    %1693 = vadd.xlane.f32.xlu0 %v1662
    %v1694 = vpop.xlane.xlu0 %1693
    %1695 = vadd.xlane.f32.xlu0 %v1664
    %v1696 = vpop.xlane.xlu0 %1695
    %1697 = vadd.xlane.f32.xlu0 %v1666
    %v1698 = vpop.xlane.xlu0 %1697
    %1699 = vadd.xlane.f32.xlu0 %v1668
    %v1700 = vpop.xlane.xlu0 %1699
    %1701 = vadd.xlane.f32.xlu0 %v1670
    %v1702 = vpop.xlane.xlu0 %1701
    %v1703 = vrcp.pop %v1672
    %v1704 = vrcp.pop %v1674
    %v1705 = vrcp.pop %v1676
    %v1706 = vrcp.pop %v1678
    %v1707 = vrcp.pop %v1680
    %v1708 = vrcp.pop %v1682
    %v1709 = vrcp.pop %v1684
    %v1710 = vrcp.pop %v1686
    %v1711 = vrcp.pop %v1688
    %v1712 = vrcp.pop %v1690
    %v1713 = vrcp.pop %v1692
    %v1714 = vrcp.pop %v1694
    %v1715 = vrcp.pop %v1696
    %v1716 = vrcp.pop %v1698
    %v1717 = vrcp.pop %v1700
    %v1718 = vrcp.pop %v1702
    %v1719 = vmul.f32 %v1672, %v1703
    %v1720 = vmul.f32 %v1674, %v1704
    %v1721 = vmul.f32 %v1676, %v1705
    %v1722 = vmul.f32 %v1678, %v1706
    %v1723 = vmul.f32 %v1680, %v1707
    %v1724 = vmul.f32 %v1682, %v1708
    %v1725 = vmul.f32 %v1684, %v1709
    %v1726 = vmul.f32 %v1686, %v1710
    %v1727 = vmul.f32 %v1688, %v1711
    %v1728 = vmul.f32 %v1690, %v1712
    %v1729 = vmul.f32 %v1692, %v1713
    %v1730 = vmul.f32 %v1694, %v1714
    %v1731 = vmul.f32 %v1696, %v1715
    %v1732 = vmul.f32 %v1698, %v1716
    %v1733 = vmul.f32 %v1700, %v1717
    %v1734 = vmul.f32 %v1702, %v1718
    %v1735 = vsub.f32 2.0, %v1719
    %v1736 = vsub.f32 2.0, %v1720
    %v1737 = vsub.f32 2.0, %v1721
    %v1738 = vsub.f32 2.0, %v1722
    %v1739 = vsub.f32 2.0, %v1723
    %v1740 = vsub.f32 2.0, %v1724
    %v1741 = vsub.f32 2.0, %v1725
    %v1742 = vsub.f32 2.0, %v1726
    %v1743 = vsub.f32 2.0, %v1727
    %v1744 = vsub.f32 2.0, %v1728
    %v1745 = vsub.f32 2.0, %v1729
    %v1746 = vsub.f32 2.0, %v1730
    %v1747 = vsub.f32 2.0, %v1731
    %v1748 = vsub.f32 2.0, %v1732
    %v1749 = vsub.f32 2.0, %v1733
    %v1750 = vsub.f32 2.0, %v1734
    %v1751 = vmul.f32 %v1703, %v1735
    %v1752 = vmul.f32 %v1704, %v1736
    %v1753 = vmul.f32 %v1705, %v1737
    %v1754 = vmul.f32 %v1706, %v1738
    %v1755 = vmul.f32 %v1707, %v1739
    %v1756 = vmul.f32 %v1708, %v1740
    %v1757 = vmul.f32 %v1709, %v1741
    %v1758 = vmul.f32 %v1710, %v1742
    %v1759 = vmul.f32 %v1711, %v1743
    %v1760 = vmul.f32 %v1712, %v1744
    %v1761 = vmul.f32 %v1713, %v1745
    %v1762 = vmul.f32 %v1714, %v1746
    %v1763 = vmul.f32 %v1715, %v1747
    %v1764 = vmul.f32 %v1716, %v1748
    %v1765 = vmul.f32 %v1717, %v1749
    %v1766 = vmul.f32 %v1718, %v1750
    %v1767 = vmul.f32 %v1640, %v1751
    %v1768 = vmul.f32 %v1642, %v1752
    %v1769 = vmul.f32 %v1644, %v1753
    %v1770 = vmul.f32 %v1646, %v1754
    %v1771 = vmul.f32 %v1648, %v1755
    %v1772 = vmul.f32 %v1650, %v1756
    %v1773 = vmul.f32 %v1652, %v1757
    %v1774 = vmul.f32 %v1654, %v1758
    %v1775 = vmul.f32 %v1656, %v1759
    %v1776 = vmul.f32 %v1658, %v1760
    %v1777 = vmul.f32 %v1660, %v1761
    %v1778 = vmul.f32 %v1662, %v1762
    %v1779 = vmul.f32 %v1664, %v1763
    %v1780 = vmul.f32 %v1666, %v1764
    %v1781 = vmul.f32 %v1668, %v1765
    %v1782 = vmul.f32 %v1670, %v1766
    %vm1783 = vcmp.eq.s32.totalorder %v1573, 8
    %v1784 = vsel %vm1783, %v1533, 0.0
    %v1785 = vsel %vm1783, %v1535, 0.0
    %v1786 = vsel %vm1783, %v1538, 0.0
    %v1787 = vsel %vm1783, %v1540, 0.0
    %v1788 = vsel %vm1783, %v1543, 0.0
    %v1789 = vsel %vm1783, %v1545, 0.0
    %v1790 = vsel %vm1783, %v1548, 0.0
    %v1791 = vsel %vm1783, %v1550, 0.0
    %v1792 = vsel %vm1783, %v1553, 0.0
    %v1793 = vsel %vm1783, %v1555, 0.0
    %v1794 = vsel %vm1783, %v1558, 0.0
    %v1795 = vsel %vm1783, %v1560, 0.0
    %v1796 = vsel %vm1783, %v1563, 0.0
    %v1797 = vsel %vm1783, %v1565, 0.0
    %v1798 = vsel %vm1783, %v1568, 0.0
    %v1799 = vsel %vm1783, %v1570, 0.0
    %v1800 = vadd.f32 %v1767, %v1784
    %v1801 = vadd.f32 %v1768, %v1785
    %v1802 = vadd.f32 %v1769, %v1786
    %v1803 = vadd.f32 %v1770, %v1787
    %v1804 = vadd.f32 %v1771, %v1788
    %v1805 = vadd.f32 %v1772, %v1789
    %v1806 = vadd.f32 %v1773, %v1790
    %v1807 = vadd.f32 %v1774, %v1791
    %v1808 = vadd.f32 %v1775, %v1792
    %v1809 = vadd.f32 %v1776, %v1793
    %v1810 = vadd.f32 %v1777, %v1794
    %v1811 = vadd.f32 %v1778, %v1795
    %v1812 = vadd.f32 %v1779, %v1796
    %v1813 = vadd.f32 %v1780, %v1797
    %v1814 = vadd.f32 %v1781, %v1798
    %v1815 = vadd.f32 %v1782, %v1799
    %1816 = vst [vmem:[#allocation2] sm:$0xff] %v1800
    %1817 = vst [vmem:[#allocation2 + $0x8] sm:$0xff] %v1801
    %1818 = vst [vmem:[#allocation2 + $0x10] sm:$0xff] %v1802
    %1819 = vst [vmem:[#allocation2 + $0x18] sm:$0xff] %v1803
    %1820 = vst [vmem:[#allocation2 + $0x20] sm:$0xff] %v1804
    %1821 = vst [vmem:[#allocation2 + $0x28] sm:$0xff] %v1805
    %1822 = vst [vmem:[#allocation2 + $0x30] sm:$0xff] %v1806
    %1823 = vst [vmem:[#allocation2 + $0x38] sm:$0xff] %v1807
    %1824 = vst [vmem:[#allocation2 + $0x40] sm:$0xff] %v1808
    %1825 = vst [vmem:[#allocation2 + $0x48] sm:$0xff] %v1809
    %1826 = vst [vmem:[#allocation2 + $0x50] sm:$0xff] %v1810
    %1827 = vst [vmem:[#allocation2 + $0x58] sm:$0xff] %v1811
    %1828 = vst [vmem:[#allocation2 + $0x60] sm:$0xff] %v1812
    %1829 = vst [vmem:[#allocation2 + $0x68] sm:$0xff] %v1813
    %1830 = vst [vmem:[#allocation2 + $0x70] sm:$0xff] %v1814
    %1831 = vst [vmem:[#allocation2 + $0x78] sm:$0xff] %v1815
    // Predicated region
    $region30: #{tpu_custom_call.1} parent=1 // pred_check
      _
    $region31: #{tpu_custom_call.1} parent=1 // pred_check_branch
      %1833 = sbr.rel (0) target = $region33
    $region32: #{tpu_custom_call.1} parent=1 // pred_region
      %1835 = vsyncadd [#allocation3], 0
      %s1836 = sshll.u32 [#allocation2], 4
      %s1837 = int_to_ptr.vmem [resolvable:$true] %s1836
      %s1838 = sshll.u32 %s7, 4
      %s1839 = int_to_ptr.hbm [resolvable:$true] %s1838
      %1844 = dma.vmem_to_hbm [thread:$0]  %s1837, 2048, %s1839, [#allocation3], 128, 128, 8
    $region33: #{tpu_custom_call.1} parent=1 // pred_fallthru
      _
    // Predicated region
    $region34: #{tpu_custom_call.1} parent=1 // pred_check
      _
    $region35: #{tpu_custom_call.1} parent=1 // pred_check_branch
      %1846 = sbr.rel (0) target = $region37
    $region36: #{tpu_custom_call.1} parent=1 // pred_region
      %1848 = dma.done [#allocation3], 2048
    $region37: #{tpu_custom_call.1} parent=1 // pred_fallthru
      _
    %1849 = vsyncpa [#allocation3], 1

</llo_original>
